<compile_context>
chip_gen: v7x
topology: tpu7x:2x2x1
jax: 0.10.0
libtpu: 0.0.40
codegen_flags: <defaults>
</compile_context>

<pallas_src>
import jax
import jax.numpy as jnp
from jax.experimental import pallas as pl
from jax.experimental.pallas import tpu as pltpu


def _net_cls_kernel(x_ref, w4t_ref, b4_ref, w5t_ref, b5_ref, o_ref):
    # fc4 + ReLU  (MXU matmul with f32 accumulation)
    h = jnp.dot(x_ref[...], w4t_ref[...], preferred_element_type=jnp.float32)
    h = jnp.maximum(h + b4_ref[...], 0.0)
    # fc5
    z = jnp.dot(h, w5t_ref[...], preferred_element_type=jnp.float32) + b5_ref[...]
    # log_softmax along the class (last) axis — numerically stable form
    m = jnp.max(z, axis=-1, keepdims=True)
    lse = m + jnp.log(jnp.sum(jnp.exp(z - m), axis=-1, keepdims=True))
    o_ref[...] = (z - lse).astype(o_ref.dtype)


def net_cls_forward(x, w4, b4, w5, b5, *, block_b=256):
    """Pallas equivalent of Net_cls.forward.

    x : (B, 1024) float32
    w4: (512, 1024), b4: (512,)   -- torch nn.Linear layout (out_features, in_features)
    w5: (2, 512),    b5: (2,)
    """
    B, K = x.shape
    Dh = w4.shape[0]
    C = w5.shape[0]
    assert w4.shape == (Dh, K) and w5.shape == (C, Dh)
    assert b4.shape == (Dh,) and b5.shape == (C,)

    # Glue (metadata/layout only, done outside the kernel): pre-transpose the weights so
    # the kernel's matmuls are plain row-major x @ W, and lift biases to 2-D rows so the
    # broadcast-add is lane-dense.
    w4t = jnp.transpose(w4)          # (K, Dh)
    w5t = jnp.transpose(w5)          # (Dh, C)
    b4r = jnp.reshape(b4, (1, Dh))
    b5r = jnp.reshape(b5, (1, C))

    out_shape = jax.ShapeDtypeStruct((B, C), x.dtype)

    if B > block_b and B % block_b == 0:
        # Large-batch path: tile only the batch dim; weights stay VMEM-resident per step
        # and the grid axis is embarrassingly parallel (shards across the 2 TensorCores
        # on v7x, harmless on v5e/v6e). Per-step footprint stays well under the 16/32 MiB
        # scoped-VMEM defaults on every generation.
        return pl.pallas_call(
            _net_cls_kernel,
            out_shape=out_shape,
            grid=(B // block_b,),
            in_specs=[
                pl.BlockSpec((block_b, K), lambda i: (i, 0)),
                pl.BlockSpec((K, Dh), lambda i: (0, 0)),
                pl.BlockSpec((1, Dh), lambda i: (0, 0)),
                pl.BlockSpec((Dh, C), lambda i: (0, 0)),
                pl.BlockSpec((1, C), lambda i: (0, 0)),
            ],
            out_specs=pl.BlockSpec((block_b, C), lambda i: (i, 0)),
            compiler_params=pltpu.CompilerParams(
                dimension_semantics=("parallel",)),
        )(x, w4t, b4r, w5t, b5r)

    # Small-batch path (the shipped B=2 case): the whole problem (~2 MiB of weights,
    # 8 KiB of activations) fits in VMEM on every generation, so run a single
    # un-gridded invocation with everything resident — no per-step pipeline overhead,
    # no (8,128) blocking traps, no extra HBM round trips.
    return pl.pallas_call(
        _net_cls_kernel,
        out_shape=out_shape,
        in_specs=[pl.BlockSpec(memory_space=pltpu.MemorySpace.VMEM)] * 5,
        out_specs=pl.BlockSpec(memory_space=pltpu.MemorySpace.VMEM),
    )(x, w4t, b4r, w5t, b5r)


if __name__ == "__main__":
    key = jax.random.PRNGKey(0)
    kx, kw4, kb4, kw5, kb5 = jax.random.split(key, 5)

    B, IN, HID, CLS = 2, 1024, 512, 2
    x = jax.random.normal(kx, (B, IN), dtype=jnp.float32)
    # torch nn.Linear parameter layout: weight (out, in), bias (out,)
    w4 = jax.random.normal(kw4, (HID, IN), dtype=jnp.float32) * 0.03
    b4 = jax.random.normal(kb4, (HID,), dtype=jnp.float32) * 0.01
    w5 = jax.random.normal(kw5, (CLS, HID), dtype=jnp.float32) * 0.05
    b5 = jax.random.normal(kb5, (CLS,), dtype=jnp.float32) * 0.01

    y = net_cls_forward(x, w4, b4, w5, b5)
    jax.block_until_ready(y)

    # Pure-JAX reference (== PyTorch Net_cls.forward semantics).
    h_ref = jnp.maximum(x @ w4.T + b4, 0.0)
    z_ref = h_ref @ w5.T + b5
    ref = jax.nn.log_softmax(z_ref, axis=-1)

    assert y.shape == (B, CLS)
    assert y.dtype == x.dtype
    assert jnp.allclose(y, ref, atol=3e-2, rtol=1e-2), (
        f"max abs err {jnp.max(jnp.abs(y - ref))}")

    print("KERNEL_OK")
</pallas_src>

<mosaic_0001>
module attributes {stable_mosaic.version = 11 : i64} {
  func.func @_net_cls_kernel(%arg0: memref<2x1024xf32, #tpu.memory_space<vmem>>, %arg1: memref<1024x512xf32, #tpu.memory_space<vmem>>, %arg2: memref<1x512xf32, #tpu.memory_space<vmem>>, %arg3: memref<512x2xf32, #tpu.memory_space<vmem>>, %arg4: memref<1x2xf32, #tpu.memory_space<vmem>>, %arg5: memref<2x2xf32, #tpu.memory_space<vmem>>) attributes {dimension_semantics = [], scalar_prefetch = 0 : i64, scratch_operands = 0 : i64, tpu.core_type = #tpu.core_type<tc>} {
    %c0 = arith.constant 0 : index
    %c0_0 = arith.constant 0 : index
    %0 = vector.load %arg0[%c0, %c0_0] : memref<2x1024xf32, #tpu.memory_space<vmem>>, vector<2x1024xf32>
    %c0_1 = arith.constant 0 : index
    %c0_2 = arith.constant 0 : index
    %1 = vector.load %arg1[%c0_1, %c0_2] : memref<1024x512xf32, #tpu.memory_space<vmem>>, vector<1024x512xf32>
    %cst = arith.constant dense<0.000000e+00> : vector<2x512xf32>
    %2 = tpu.matmul %0, %1, %cst {dimension_numbers = #tpu.dot_dimension_numbers<[1], [0], [0], [1], [0, 0, 1, 1], [], []>} : vector<2x1024xf32>, vector<1024x512xf32>, vector<2x512xf32> -> vector<2x512xf32>
    %c0_3 = arith.constant 0 : index
    %c0_4 = arith.constant 0 : index
    %3 = vector.load %arg2[%c0_3, %c0_4] : memref<1x512xf32, #tpu.memory_space<vmem>>, vector<1x512xf32>
    %4 = vector.broadcast %3 : vector<1x512xf32> to vector<2x512xf32>
    %5 = arith.addf %2, %4 : vector<2x512xf32>
    %cst_5 = arith.constant 0.000000e+00 : f32
    %6 = vector.broadcast %cst_5 : f32 to vector<2x512xf32>
    %7 = arith.maximumf %5, %6 : vector<2x512xf32>
    %c0_6 = arith.constant 0 : index
    %c0_7 = arith.constant 0 : index
    %8 = vector.load %arg3[%c0_6, %c0_7] : memref<512x2xf32, #tpu.memory_space<vmem>>, vector<512x2xf32>
    %cst_8 = arith.constant dense<0.000000e+00> : vector<2x2xf32>
    %9 = tpu.matmul %7, %8, %cst_8 {dimension_numbers = #tpu.dot_dimension_numbers<[1], [0], [0], [1], [0, 0, 1, 1], [], []>} : vector<2x512xf32>, vector<512x2xf32>, vector<2x2xf32> -> vector<2x2xf32>
    %c0_9 = arith.constant 0 : index
    %c0_10 = arith.constant 0 : index
    %10 = vector.load %arg4[%c0_9, %c0_10] : memref<1x2xf32, #tpu.memory_space<vmem>>, vector<1x2xf32>
    %11 = vector.broadcast %10 : vector<1x2xf32> to vector<2x2xf32>
    %12 = arith.addf %9, %11 : vector<2x2xf32>
    %cst_11 = arith.constant dense<0xFF800000> : vector<2xf32>
    %13 = vector.multi_reduction <maximumf>, %12, %cst_11 [1] : vector<2x2xf32> to vector<2xf32>
    %14 = vector.shape_cast %13 : vector<2xf32> to vector<2x1xf32>
    %15 = vector.broadcast %14 : vector<2x1xf32> to vector<2x2xf32>
    %16 = arith.subf %12, %15 : vector<2x2xf32>
    %17 = math.exp %16 : vector<2x2xf32>
    %cst_12 = arith.constant dense<0.000000e+00> : vector<2xf32>
    %18 = vector.multi_reduction <add>, %17, %cst_12 [1] : vector<2x2xf32> to vector<2xf32>
    %19 = vector.shape_cast %18 : vector<2xf32> to vector<2x1xf32>
    %20 = math.log %19 : vector<2x1xf32>
    %21 = arith.addf %14, %20 : vector<2x1xf32>
    %22 = vector.broadcast %21 : vector<2x1xf32> to vector<2x2xf32>
    %23 = arith.subf %12, %22 : vector<2x2xf32>
    %c0_13 = arith.constant 0 : index
    %c0_14 = arith.constant 0 : index
    %24 = vector.load %arg5[%c0_13, %c0_14] : memref<2x2xf32, #tpu.memory_space<vmem>>, vector<2x2xf32>
    tpu.vector_store %arg5[%c0_13, %c0_14], %23 {strides = array<i32>} : memref<2x2xf32, #tpu.memory_space<vmem>>, vector<2x2xf32>,
    return
  }
}

</mosaic_0001>

<llo_original>
// kernel: tpu_custom_call.1
$region0: #{tpu_custom_call.1}
  #allocation0 [shape = 'u32[]', space=smem, size = 0x4, offset = 0x4, fixed_abs, tag = 'smem constant byte address 0x4 - core index']
  #allocation1 [shape = 'u32[144,128]{1,0:T(1,128)}', space=vmem, size = 0x12000, scoped, tag = 'internal scratch']
  %s0 = inlined_call_operand.hbm [shape: f32[2,1024], index: 0, kind: input, shape index: {}]
  %s1 = inlined_call_operand.hbm [shape: f32[1024,512], index: 1, kind: input, shape index: {}]
  %s2 = inlined_call_operand.hbm [shape: f32[1,512], index: 2, kind: input, shape index: {}]
  %s3 = inlined_call_operand.vmem [shape: f32[512,2], index: 3, kind: input, shape index: {}]
  %s4 = inlined_call_operand.hbm [shape: f32[1,2], index: 4, kind: input, shape index: {}]
  %s5 = inlined_call_operand.hbm [shape: f32[2,2], index: 5, kind: output, shape index: {}]
  %s6 = sld [smem:[#allocation0]]
  $region46: #{tpu_custom_call.1} parent=0
    _
  %s8 = ssub.s32 1, %s6
  %s9 = scalar_select 0, %s8, %s6
  $region1: #{tpu_custom_call.1} parent=0
    #allocation2 [shape = 'u8[8192]{0}', space=vmem, size = 0x2000, scoped, tag = 'input window, operand 0, single buffered']
    #allocation3 [shape = 's32[1]{0}', space=sflag, size = 0x4, scoped, tag = 'scoped memory for tpu_custom_call.1']
    #allocation4 [shape = 's32[1]{0}', space=sflag, size = 0x4, scoped, tag = 'scoped memory for tpu_custom_call.1']
    #allocation5 [shape = 'u8[2097152]{0}', space=vmem, size = 0x200000, scoped, tag = 'input window, operand 1, single buffered']
    #allocation6 [shape = 's32[1]{0}', space=sflag, size = 0x4, scoped, tag = 'scoped memory for tpu_custom_call.1']
    #allocation7 [shape = 'u8[2048]{0}', space=vmem, size = 0x800, scoped, tag = 'input window, operand 2, single buffered']
    #allocation8 [shape = 'u8[512]{0}', space=vmem, size = 0x400, scoped, tag = 'input window, operand 4, single buffered']
    #allocation9 [shape = 's32[1]{0}', space=sflag, size = 0x4, scoped, tag = 'scoped memory for tpu_custom_call.1']
    #allocation10 [shape = 'u8[1024]{0}', space=vmem, size = 0x400, scoped, tag = 'output window, operand 0, single buffered']
    %10 = vsyncpa [#allocation3], 0
    %11 = vsyncpa [#allocation6], 0
    %12 = vsyncpa [#allocation9], 0
    %13 = vsyncpa [#allocation4], 0
    // Predicated region
    $region2: #{tpu_custom_call.1} parent=1 // pred_check
      _
    $region3: #{tpu_custom_call.1} parent=1 // pred_check_branch
      %15 = sbr.rel (0) target = $region5
    $region4: #{tpu_custom_call.1} parent=1 // pred_region
      %s17 = ssub.s32 256, 256
      %18 = vsyncadd [#allocation3], %s17
      %s20 = sshll.u32 [#allocation2], 4
      %s21 = int_to_ptr.vmem [resolvable:$true] %s20
      %23 = dma.hbm_to_vmem [thread:$0]  %s0, 256, %s21, [#allocation3]
    $region5: #{tpu_custom_call.1} parent=1 // pred_fallthru
      _
    // Predicated region
    $region6: #{tpu_custom_call.1} parent=1 // pred_check
      _
    $region7: #{tpu_custom_call.1} parent=1 // pred_check_branch
      %25 = sbr.rel (0) target = $region9
    $region8: #{tpu_custom_call.1} parent=1 // pred_region
      %s27 = ssub.s32 65536, 65536
      %28 = vsyncadd [#allocation6], %s27
      %s29 = sshll.u32 [#allocation5], 4
      %s30 = int_to_ptr.vmem [resolvable:$true] %s29
      %35 = dma.hbm_to_vmem [thread:$0]  %s1, 65536, %s30, [#allocation6], 512, 512, 32
    $region9: #{tpu_custom_call.1} parent=1 // pred_fallthru
      _
    // Predicated region
    $region10: #{tpu_custom_call.1} parent=1 // pred_check
      _
    $region11: #{tpu_custom_call.1} parent=1 // pred_check_branch
      %37 = sbr.rel (0) target = $region13
    $region12: #{tpu_custom_call.1} parent=1 // pred_region
      %s39 = ssub.s32 64, 64
      %40 = vsyncadd [#allocation6], %s39
      %s42 = sshll.u32 [#allocation7], 4
      %s43 = int_to_ptr.vmem [resolvable:$true] %s42
      %45 = dma.hbm_to_vmem [thread:$0]  %s2, 64, %s43, [#allocation6]
    $region13: #{tpu_custom_call.1} parent=1 // pred_fallthru
      _
    // Predicated region
    $region14: #{tpu_custom_call.1} parent=1 // pred_check
      _
    $region15: #{tpu_custom_call.1} parent=1 // pred_check_branch
      %47 = sbr.rel (0) target = $region17
    $region16: #{tpu_custom_call.1} parent=1 // pred_region
      _
    $region17: #{tpu_custom_call.1} parent=1 // pred_fallthru
      _
    // Predicated region
    $region18: #{tpu_custom_call.1} parent=1 // pred_check
      _
    $region19: #{tpu_custom_call.1} parent=1 // pred_check_branch
      %49 = sbr.rel (0) target = $region21
    $region20: #{tpu_custom_call.1} parent=1 // pred_region
      %s51 = ssub.s32 16, 16
      %52 = vsyncadd [#allocation9], %s51
      %s54 = sshll.u32 [#allocation8], 4
      %s55 = int_to_ptr.vmem [resolvable:$true] %s54
      %57 = dma.hbm_to_vmem [thread:$0]  %s4, 16, %s55, [#allocation9]
    $region21: #{tpu_custom_call.1} parent=1 // pred_fallthru
      _
    // Predicated region
    $region22: #{tpu_custom_call.1} parent=1 // pred_check
      _
    $region23: #{tpu_custom_call.1} parent=1 // pred_check_branch
      %59 = sbr.rel (0) target = $region25
    $region24: #{tpu_custom_call.1} parent=1 // pred_region
      %60 = dma.done [#allocation3], 256
    $region25: #{tpu_custom_call.1} parent=1 // pred_fallthru
      _
    // Predicated region
    $region26: #{tpu_custom_call.1} parent=1 // pred_check
      _
    $region27: #{tpu_custom_call.1} parent=1 // pred_check_branch
      %62 = sbr.rel (0) target = $region29
    $region28: #{tpu_custom_call.1} parent=1 // pred_region
      %63 = dma.done [#allocation6], 65536
    $region29: #{tpu_custom_call.1} parent=1 // pred_fallthru
      _
    // Predicated region
    $region30: #{tpu_custom_call.1} parent=1 // pred_check
      _
    $region31: #{tpu_custom_call.1} parent=1 // pred_check_branch
      %65 = sbr.rel (0) target = $region33
    $region32: #{tpu_custom_call.1} parent=1 // pred_region
      %66 = dma.done [#allocation6], 64
    $region33: #{tpu_custom_call.1} parent=1 // pred_fallthru
      _
    // Predicated region
    $region34: #{tpu_custom_call.1} parent=1 // pred_check
      _
    $region35: #{tpu_custom_call.1} parent=1 // pred_check_branch
      %68 = sbr.rel (0) target = $region37
    $region36: #{tpu_custom_call.1} parent=1 // pred_region
      %69 = dma.done [#allocation9], 16
    $region37: #{tpu_custom_call.1} parent=1 // pred_fallthru
      _
    %v70 = vld [vmem:[#allocation2] sm:$0xff]
    %v71 = vld [vmem:[#allocation2 + $0x8] sm:$0xff]
    %v72 = vld [vmem:[#allocation5] sm:$0xff]
    %v73 = vld [vmem:[#allocation5 + $0x8] sm:$0xff]
    %v74 = vld [vmem:[#allocation5 + $0x10] sm:$0xff]
    %v75 = vld [vmem:[#allocation5 + $0x18] sm:$0xff]
    %v76 = vld [vmem:[#allocation5 + $0x20] sm:$0xff]
    %v77 = vld [vmem:[#allocation5 + $0x28] sm:$0xff]
    %v78 = vld [vmem:[#allocation5 + $0x30] sm:$0xff]
    %v79 = vld [vmem:[#allocation5 + $0x38] sm:$0xff]
    %v80 = vld [vmem:[#allocation5 + $0x40] sm:$0xff]
    %v81 = vld [vmem:[#allocation5 + $0x48] sm:$0xff]
    %v82 = vld [vmem:[#allocation5 + $0x50] sm:$0xff]
    %v83 = vld [vmem:[#allocation5 + $0x58] sm:$0xff]
    %v84 = vld [vmem:[#allocation5 + $0x60] sm:$0xff]
    %v85 = vld [vmem:[#allocation5 + $0x68] sm:$0xff]
    %v86 = vld [vmem:[#allocation5 + $0x70] sm:$0xff]
    %v87 = vld [vmem:[#allocation5 + $0x78] sm:$0xff]
    %v88 = vld [vmem:[#allocation5 + $0x80] sm:$0xff]
    %v89 = vld [vmem:[#allocation5 + $0x88] sm:$0xff]
    %v90 = vld [vmem:[#allocation5 + $0x90] sm:$0xff]
    %v91 = vld [vmem:[#allocation5 + $0x98] sm:$0xff]
    %v92 = vld [vmem:[#allocation5 + $0xa0] sm:$0xff]
    %v93 = vld [vmem:[#allocation5 + $0xa8] sm:$0xff]
    %v94 = vld [vmem:[#allocation5 + $0xb0] sm:$0xff]
    %v95 = vld [vmem:[#allocation5 + $0xb8] sm:$0xff]
    %v96 = vld [vmem:[#allocation5 + $0xc0] sm:$0xff]
    %v97 = vld [vmem:[#allocation5 + $0xc8] sm:$0xff]
    %v98 = vld [vmem:[#allocation5 + $0xd0] sm:$0xff]
    %v99 = vld [vmem:[#allocation5 + $0xd8] sm:$0xff]
    %v100 = vld [vmem:[#allocation5 + $0xe0] sm:$0xff]
    %v101 = vld [vmem:[#allocation5 + $0xe8] sm:$0xff]
    %v102 = vld [vmem:[#allocation5 + $0xf0] sm:$0xff]
    %v103 = vld [vmem:[#allocation5 + $0xf8] sm:$0xff]
    %v104 = vld [vmem:[#allocation5 + $0x100] sm:$0xff]
    %v105 = vld [vmem:[#allocation5 + $0x108] sm:$0xff]
    %v106 = vld [vmem:[#allocation5 + $0x110] sm:$0xff]
    %v107 = vld [vmem:[#allocation5 + $0x118] sm:$0xff]
    %v108 = vld [vmem:[#allocation5 + $0x120] sm:$0xff]
    %v109 = vld [vmem:[#allocation5 + $0x128] sm:$0xff]
    %v110 = vld [vmem:[#allocation5 + $0x130] sm:$0xff]
    %v111 = vld [vmem:[#allocation5 + $0x138] sm:$0xff]
    %v112 = vld [vmem:[#allocation5 + $0x140] sm:$0xff]
    %v113 = vld [vmem:[#allocation5 + $0x148] sm:$0xff]
    %v114 = vld [vmem:[#allocation5 + $0x150] sm:$0xff]
    %v115 = vld [vmem:[#allocation5 + $0x158] sm:$0xff]
    %v116 = vld [vmem:[#allocation5 + $0x160] sm:$0xff]
    %v117 = vld [vmem:[#allocation5 + $0x168] sm:$0xff]
    %v118 = vld [vmem:[#allocation5 + $0x170] sm:$0xff]
    %v119 = vld [vmem:[#allocation5 + $0x178] sm:$0xff]
    %v120 = vld [vmem:[#allocation5 + $0x180] sm:$0xff]
    %v121 = vld [vmem:[#allocation5 + $0x188] sm:$0xff]
    %v122 = vld [vmem:[#allocation5 + $0x190] sm:$0xff]
    %v123 = vld [vmem:[#allocation5 + $0x198] sm:$0xff]
    %v124 = vld [vmem:[#allocation5 + $0x1a0] sm:$0xff]
    %v125 = vld [vmem:[#allocation5 + $0x1a8] sm:$0xff]
    %v126 = vld [vmem:[#allocation5 + $0x1b0] sm:$0xff]
    %v127 = vld [vmem:[#allocation5 + $0x1b8] sm:$0xff]
    %v128 = vld [vmem:[#allocation5 + $0x1c0] sm:$0xff]
    %v129 = vld [vmem:[#allocation5 + $0x1c8] sm:$0xff]
    %v130 = vld [vmem:[#allocation5 + $0x1d0] sm:$0xff]
    %v131 = vld [vmem:[#allocation5 + $0x1d8] sm:$0xff]
    %v132 = vld [vmem:[#allocation5 + $0x1e0] sm:$0xff]
    %v133 = vld [vmem:[#allocation5 + $0x1e8] sm:$0xff]
    %v134 = vld [vmem:[#allocation5 + $0x1f0] sm:$0xff]
    %v135 = vld [vmem:[#allocation5 + $0x1f8] sm:$0xff]
    %v136 = vld [vmem:[#allocation5 + $0x200] sm:$0xff]
    %v137 = vld [vmem:[#allocation5 + $0x208] sm:$0xff]
    %v138 = vld [vmem:[#allocation5 + $0x210] sm:$0xff]
    %v139 = vld [vmem:[#allocation5 + $0x218] sm:$0xff]
    %v140 = vld [vmem:[#allocation5 + $0x220] sm:$0xff]
    %v141 = vld [vmem:[#allocation5 + $0x228] sm:$0xff]
    %v142 = vld [vmem:[#allocation5 + $0x230] sm:$0xff]
    %v143 = vld [vmem:[#allocation5 + $0x238] sm:$0xff]
    %v144 = vld [vmem:[#allocation5 + $0x240] sm:$0xff]
    %v145 = vld [vmem:[#allocation5 + $0x248] sm:$0xff]
    %v146 = vld [vmem:[#allocation5 + $0x250] sm:$0xff]
    %v147 = vld [vmem:[#allocation5 + $0x258] sm:$0xff]
    %v148 = vld [vmem:[#allocation5 + $0x260] sm:$0xff]
    %v149 = vld [vmem:[#allocation5 + $0x268] sm:$0xff]
    %v150 = vld [vmem:[#allocation5 + $0x270] sm:$0xff]
    %v151 = vld [vmem:[#allocation5 + $0x278] sm:$0xff]
    %v152 = vld [vmem:[#allocation5 + $0x280] sm:$0xff]
    %v153 = vld [vmem:[#allocation5 + $0x288] sm:$0xff]
    %v154 = vld [vmem:[#allocation5 + $0x290] sm:$0xff]
    %v155 = vld [vmem:[#allocation5 + $0x298] sm:$0xff]
    %v156 = vld [vmem:[#allocation5 + $0x2a0] sm:$0xff]
    %v157 = vld [vmem:[#allocation5 + $0x2a8] sm:$0xff]
    %v158 = vld [vmem:[#allocation5 + $0x2b0] sm:$0xff]
    %v159 = vld [vmem:[#allocation5 + $0x2b8] sm:$0xff]
    %v160 = vld [vmem:[#allocation5 + $0x2c0] sm:$0xff]
    %v161 = vld [vmem:[#allocation5 + $0x2c8] sm:$0xff]
    %v162 = vld [vmem:[#allocation5 + $0x2d0] sm:$0xff]
    %v163 = vld [vmem:[#allocation5 + $0x2d8] sm:$0xff]
    %v164 = vld [vmem:[#allocation5 + $0x2e0] sm:$0xff]
    %v165 = vld [vmem:[#allocation5 + $0x2e8] sm:$0xff]
    %v166 = vld [vmem:[#allocation5 + $0x2f0] sm:$0xff]
    %v167 = vld [vmem:[#allocation5 + $0x2f8] sm:$0xff]
    %v168 = vld [vmem:[#allocation5 + $0x300] sm:$0xff]
    %v169 = vld [vmem:[#allocation5 + $0x308] sm:$0xff]
    %v170 = vld [vmem:[#allocation5 + $0x310] sm:$0xff]
    %v171 = vld [vmem:[#allocation5 + $0x318] sm:$0xff]
    %v172 = vld [vmem:[#allocation5 + $0x320] sm:$0xff]
    %v173 = vld [vmem:[#allocation5 + $0x328] sm:$0xff]
    %v174 = vld [vmem:[#allocation5 + $0x330] sm:$0xff]
    %v175 = vld [vmem:[#allocation5 + $0x338] sm:$0xff]
    %v176 = vld [vmem:[#allocation5 + $0x340] sm:$0xff]
    %v177 = vld [vmem:[#allocation5 + $0x348] sm:$0xff]
    %v178 = vld [vmem:[#allocation5 + $0x350] sm:$0xff]
    %v179 = vld [vmem:[#allocation5 + $0x358] sm:$0xff]
    %v180 = vld [vmem:[#allocation5 + $0x360] sm:$0xff]
    %v181 = vld [vmem:[#allocation5 + $0x368] sm:$0xff]
    %v182 = vld [vmem:[#allocation5 + $0x370] sm:$0xff]
    %v183 = vld [vmem:[#allocation5 + $0x378] sm:$0xff]
    %v184 = vld [vmem:[#allocation5 + $0x380] sm:$0xff]
    %v185 = vld [vmem:[#allocation5 + $0x388] sm:$0xff]
    %v186 = vld [vmem:[#allocation5 + $0x390] sm:$0xff]
    %v187 = vld [vmem:[#allocation5 + $0x398] sm:$0xff]
    %v188 = vld [vmem:[#allocation5 + $0x3a0] sm:$0xff]
    %v189 = vld [vmem:[#allocation5 + $0x3a8] sm:$0xff]
    %v190 = vld [vmem:[#allocation5 + $0x3b0] sm:$0xff]
    %v191 = vld [vmem:[#allocation5 + $0x3b8] sm:$0xff]
    %v192 = vld [vmem:[#allocation5 + $0x3c0] sm:$0xff]
    %v193 = vld [vmem:[#allocation5 + $0x3c8] sm:$0xff]
    %v194 = vld [vmem:[#allocation5 + $0x3d0] sm:$0xff]
    %v195 = vld [vmem:[#allocation5 + $0x3d8] sm:$0xff]
    %v196 = vld [vmem:[#allocation5 + $0x3e0] sm:$0xff]
    %v197 = vld [vmem:[#allocation5 + $0x3e8] sm:$0xff]
    %v198 = vld [vmem:[#allocation5 + $0x3f0] sm:$0xff]
    %v199 = vld [vmem:[#allocation5 + $0x3f8] sm:$0xff]
    %v200 = vld [vmem:[#allocation5 + $0x400] sm:$0xff]
    %v201 = vld [vmem:[#allocation5 + $0x408] sm:$0xff]
    %v202 = vld [vmem:[#allocation5 + $0x410] sm:$0xff]
    %v203 = vld [vmem:[#allocation5 + $0x418] sm:$0xff]
    %v204 = vld [vmem:[#allocation5 + $0x420] sm:$0xff]
    %v205 = vld [vmem:[#allocation5 + $0x428] sm:$0xff]
    %v206 = vld [vmem:[#allocation5 + $0x430] sm:$0xff]
    %v207 = vld [vmem:[#allocation5 + $0x438] sm:$0xff]
    %v208 = vld [vmem:[#allocation5 + $0x440] sm:$0xff]
    %v209 = vld [vmem:[#allocation5 + $0x448] sm:$0xff]
    %v210 = vld [vmem:[#allocation5 + $0x450] sm:$0xff]
    %v211 = vld [vmem:[#allocation5 + $0x458] sm:$0xff]
    %v212 = vld [vmem:[#allocation5 + $0x460] sm:$0xff]
    %v213 = vld [vmem:[#allocation5 + $0x468] sm:$0xff]
    %v214 = vld [vmem:[#allocation5 + $0x470] sm:$0xff]
    %v215 = vld [vmem:[#allocation5 + $0x478] sm:$0xff]
    %v216 = vld [vmem:[#allocation5 + $0x480] sm:$0xff]
    %v217 = vld [vmem:[#allocation5 + $0x488] sm:$0xff]
    %v218 = vld [vmem:[#allocation5 + $0x490] sm:$0xff]
    %v219 = vld [vmem:[#allocation5 + $0x498] sm:$0xff]
    %v220 = vld [vmem:[#allocation5 + $0x4a0] sm:$0xff]
    %v221 = vld [vmem:[#allocation5 + $0x4a8] sm:$0xff]
    %v222 = vld [vmem:[#allocation5 + $0x4b0] sm:$0xff]
    %v223 = vld [vmem:[#allocation5 + $0x4b8] sm:$0xff]
    %v224 = vld [vmem:[#allocation5 + $0x4c0] sm:$0xff]
    %v225 = vld [vmem:[#allocation5 + $0x4c8] sm:$0xff]
    %v226 = vld [vmem:[#allocation5 + $0x4d0] sm:$0xff]
    %v227 = vld [vmem:[#allocation5 + $0x4d8] sm:$0xff]
    %v228 = vld [vmem:[#allocation5 + $0x4e0] sm:$0xff]
    %v229 = vld [vmem:[#allocation5 + $0x4e8] sm:$0xff]
    %v230 = vld [vmem:[#allocation5 + $0x4f0] sm:$0xff]
    %v231 = vld [vmem:[#allocation5 + $0x4f8] sm:$0xff]
    %v232 = vld [vmem:[#allocation5 + $0x500] sm:$0xff]
    %v233 = vld [vmem:[#allocation5 + $0x508] sm:$0xff]
    %v234 = vld [vmem:[#allocation5 + $0x510] sm:$0xff]
    %v235 = vld [vmem:[#allocation5 + $0x518] sm:$0xff]
    %v236 = vld [vmem:[#allocation5 + $0x520] sm:$0xff]
    %v237 = vld [vmem:[#allocation5 + $0x528] sm:$0xff]
    %v238 = vld [vmem:[#allocation5 + $0x530] sm:$0xff]
    %v239 = vld [vmem:[#allocation5 + $0x538] sm:$0xff]
    %v240 = vld [vmem:[#allocation5 + $0x540] sm:$0xff]
    %v241 = vld [vmem:[#allocation5 + $0x548] sm:$0xff]
    %v242 = vld [vmem:[#allocation5 + $0x550] sm:$0xff]
    %v243 = vld [vmem:[#allocation5 + $0x558] sm:$0xff]
    %v244 = vld [vmem:[#allocation5 + $0x560] sm:$0xff]
    %v245 = vld [vmem:[#allocation5 + $0x568] sm:$0xff]
    %v246 = vld [vmem:[#allocation5 + $0x570] sm:$0xff]
    %v247 = vld [vmem:[#allocation5 + $0x578] sm:$0xff]
    %v248 = vld [vmem:[#allocation5 + $0x580] sm:$0xff]
    %v249 = vld [vmem:[#allocation5 + $0x588] sm:$0xff]
    %v250 = vld [vmem:[#allocation5 + $0x590] sm:$0xff]
    %v251 = vld [vmem:[#allocation5 + $0x598] sm:$0xff]
    %v252 = vld [vmem:[#allocation5 + $0x5a0] sm:$0xff]
    %v253 = vld [vmem:[#allocation5 + $0x5a8] sm:$0xff]
    %v254 = vld [vmem:[#allocation5 + $0x5b0] sm:$0xff]
    %v255 = vld [vmem:[#allocation5 + $0x5b8] sm:$0xff]
    %v256 = vld [vmem:[#allocation5 + $0x5c0] sm:$0xff]
    %v257 = vld [vmem:[#allocation5 + $0x5c8] sm:$0xff]
    %v258 = vld [vmem:[#allocation5 + $0x5d0] sm:$0xff]
    %v259 = vld [vmem:[#allocation5 + $0x5d8] sm:$0xff]
    %v260 = vld [vmem:[#allocation5 + $0x5e0] sm:$0xff]
    %v261 = vld [vmem:[#allocation5 + $0x5e8] sm:$0xff]
    %v262 = vld [vmem:[#allocation5 + $0x5f0] sm:$0xff]
    %v263 = vld [vmem:[#allocation5 + $0x5f8] sm:$0xff]
    %v264 = vld [vmem:[#allocation5 + $0x600] sm:$0xff]
    %v265 = vld [vmem:[#allocation5 + $0x608] sm:$0xff]
    %v266 = vld [vmem:[#allocation5 + $0x610] sm:$0xff]
    %v267 = vld [vmem:[#allocation5 + $0x618] sm:$0xff]
    %v268 = vld [vmem:[#allocation5 + $0x620] sm:$0xff]
    %v269 = vld [vmem:[#allocation5 + $0x628] sm:$0xff]
    %v270 = vld [vmem:[#allocation5 + $0x630] sm:$0xff]
    %v271 = vld [vmem:[#allocation5 + $0x638] sm:$0xff]
    %v272 = vld [vmem:[#allocation5 + $0x640] sm:$0xff]
    %v273 = vld [vmem:[#allocation5 + $0x648] sm:$0xff]
    %v274 = vld [vmem:[#allocation5 + $0x650] sm:$0xff]
    %v275 = vld [vmem:[#allocation5 + $0x658] sm:$0xff]
    %v276 = vld [vmem:[#allocation5 + $0x660] sm:$0xff]
    %v277 = vld [vmem:[#allocation5 + $0x668] sm:$0xff]
    %v278 = vld [vmem:[#allocation5 + $0x670] sm:$0xff]
    %v279 = vld [vmem:[#allocation5 + $0x678] sm:$0xff]
    %v280 = vld [vmem:[#allocation5 + $0x680] sm:$0xff]
    %v281 = vld [vmem:[#allocation5 + $0x688] sm:$0xff]
    %v282 = vld [vmem:[#allocation5 + $0x690] sm:$0xff]
    %v283 = vld [vmem:[#allocation5 + $0x698] sm:$0xff]
    %v284 = vld [vmem:[#allocation5 + $0x6a0] sm:$0xff]
    %v285 = vld [vmem:[#allocation5 + $0x6a8] sm:$0xff]
    %v286 = vld [vmem:[#allocation5 + $0x6b0] sm:$0xff]
    %v287 = vld [vmem:[#allocation5 + $0x6b8] sm:$0xff]
    %v288 = vld [vmem:[#allocation5 + $0x6c0] sm:$0xff]
    %v289 = vld [vmem:[#allocation5 + $0x6c8] sm:$0xff]
    %v290 = vld [vmem:[#allocation5 + $0x6d0] sm:$0xff]
    %v291 = vld [vmem:[#allocation5 + $0x6d8] sm:$0xff]
    %v292 = vld [vmem:[#allocation5 + $0x6e0] sm:$0xff]
    %v293 = vld [vmem:[#allocation5 + $0x6e8] sm:$0xff]
    %v294 = vld [vmem:[#allocation5 + $0x6f0] sm:$0xff]
    %v295 = vld [vmem:[#allocation5 + $0x6f8] sm:$0xff]
    %v296 = vld [vmem:[#allocation5 + $0x700] sm:$0xff]
    %v297 = vld [vmem:[#allocation5 + $0x708] sm:$0xff]
    %v298 = vld [vmem:[#allocation5 + $0x710] sm:$0xff]
    %v299 = vld [vmem:[#allocation5 + $0x718] sm:$0xff]
    %v300 = vld [vmem:[#allocation5 + $0x720] sm:$0xff]
    %v301 = vld [vmem:[#allocation5 + $0x728] sm:$0xff]
    %v302 = vld [vmem:[#allocation5 + $0x730] sm:$0xff]
    %v303 = vld [vmem:[#allocation5 + $0x738] sm:$0xff]
    %v304 = vld [vmem:[#allocation5 + $0x740] sm:$0xff]
    %v305 = vld [vmem:[#allocation5 + $0x748] sm:$0xff]
    %v306 = vld [vmem:[#allocation5 + $0x750] sm:$0xff]
    %v307 = vld [vmem:[#allocation5 + $0x758] sm:$0xff]
    %v308 = vld [vmem:[#allocation5 + $0x760] sm:$0xff]
    %v309 = vld [vmem:[#allocation5 + $0x768] sm:$0xff]
    %v310 = vld [vmem:[#allocation5 + $0x770] sm:$0xff]
    %v311 = vld [vmem:[#allocation5 + $0x778] sm:$0xff]
    %v312 = vld [vmem:[#allocation5 + $0x780] sm:$0xff]
    %v313 = vld [vmem:[#allocation5 + $0x788] sm:$0xff]
    %v314 = vld [vmem:[#allocation5 + $0x790] sm:$0xff]
    %v315 = vld [vmem:[#allocation5 + $0x798] sm:$0xff]
    %v316 = vld [vmem:[#allocation5 + $0x7a0] sm:$0xff]
    %v317 = vld [vmem:[#allocation5 + $0x7a8] sm:$0xff]
    %v318 = vld [vmem:[#allocation5 + $0x7b0] sm:$0xff]
    %v319 = vld [vmem:[#allocation5 + $0x7b8] sm:$0xff]
    %v320 = vld [vmem:[#allocation5 + $0x7c0] sm:$0xff]
    %v321 = vld [vmem:[#allocation5 + $0x7c8] sm:$0xff]
    %v322 = vld [vmem:[#allocation5 + $0x7d0] sm:$0xff]
    %v323 = vld [vmem:[#allocation5 + $0x7d8] sm:$0xff]
    %v324 = vld [vmem:[#allocation5 + $0x7e0] sm:$0xff]
    %v325 = vld [vmem:[#allocation5 + $0x7e8] sm:$0xff]
    %v326 = vld [vmem:[#allocation5 + $0x7f0] sm:$0xff]
    %v327 = vld [vmem:[#allocation5 + $0x7f8] sm:$0xff]
    %v328 = vld [vmem:[#allocation5 + $0x800] sm:$0xff]
    %v329 = vld [vmem:[#allocation5 + $0x808] sm:$0xff]
    %v330 = vld [vmem:[#allocation5 + $0x810] sm:$0xff]
    %v331 = vld [vmem:[#allocation5 + $0x818] sm:$0xff]
    %v332 = vld [vmem:[#allocation5 + $0x820] sm:$0xff]
    %v333 = vld [vmem:[#allocation5 + $0x828] sm:$0xff]
    %v334 = vld [vmem:[#allocation5 + $0x830] sm:$0xff]
    %v335 = vld [vmem:[#allocation5 + $0x838] sm:$0xff]
    %v336 = vld [vmem:[#allocation5 + $0x840] sm:$0xff]
    %v337 = vld [vmem:[#allocation5 + $0x848] sm:$0xff]
    %v338 = vld [vmem:[#allocation5 + $0x850] sm:$0xff]
    %v339 = vld [vmem:[#allocation5 + $0x858] sm:$0xff]
    %v340 = vld [vmem:[#allocation5 + $0x860] sm:$0xff]
    %v341 = vld [vmem:[#allocation5 + $0x868] sm:$0xff]
    %v342 = vld [vmem:[#allocation5 + $0x870] sm:$0xff]
    %v343 = vld [vmem:[#allocation5 + $0x878] sm:$0xff]
    %v344 = vld [vmem:[#allocation5 + $0x880] sm:$0xff]
    %v345 = vld [vmem:[#allocation5 + $0x888] sm:$0xff]
    %v346 = vld [vmem:[#allocation5 + $0x890] sm:$0xff]
    %v347 = vld [vmem:[#allocation5 + $0x898] sm:$0xff]
    %v348 = vld [vmem:[#allocation5 + $0x8a0] sm:$0xff]
    %v349 = vld [vmem:[#allocation5 + $0x8a8] sm:$0xff]
    %v350 = vld [vmem:[#allocation5 + $0x8b0] sm:$0xff]
    %v351 = vld [vmem:[#allocation5 + $0x8b8] sm:$0xff]
    %v352 = vld [vmem:[#allocation5 + $0x8c0] sm:$0xff]
    %v353 = vld [vmem:[#allocation5 + $0x8c8] sm:$0xff]
    %v354 = vld [vmem:[#allocation5 + $0x8d0] sm:$0xff]
    %v355 = vld [vmem:[#allocation5 + $0x8d8] sm:$0xff]
    %v356 = vld [vmem:[#allocation5 + $0x8e0] sm:$0xff]
    %v357 = vld [vmem:[#allocation5 + $0x8e8] sm:$0xff]
    %v358 = vld [vmem:[#allocation5 + $0x8f0] sm:$0xff]
    %v359 = vld [vmem:[#allocation5 + $0x8f8] sm:$0xff]
    %v360 = vld [vmem:[#allocation5 + $0x900] sm:$0xff]
    %v361 = vld [vmem:[#allocation5 + $0x908] sm:$0xff]
    %v362 = vld [vmem:[#allocation5 + $0x910] sm:$0xff]
    %v363 = vld [vmem:[#allocation5 + $0x918] sm:$0xff]
    %v364 = vld [vmem:[#allocation5 + $0x920] sm:$0xff]
    %v365 = vld [vmem:[#allocation5 + $0x928] sm:$0xff]
    %v366 = vld [vmem:[#allocation5 + $0x930] sm:$0xff]
    %v367 = vld [vmem:[#allocation5 + $0x938] sm:$0xff]
    %v368 = vld [vmem:[#allocation5 + $0x940] sm:$0xff]
    %v369 = vld [vmem:[#allocation5 + $0x948] sm:$0xff]
    %v370 = vld [vmem:[#allocation5 + $0x950] sm:$0xff]
    %v371 = vld [vmem:[#allocation5 + $0x958] sm:$0xff]
    %v372 = vld [vmem:[#allocation5 + $0x960] sm:$0xff]
    %v373 = vld [vmem:[#allocation5 + $0x968] sm:$0xff]
    %v374 = vld [vmem:[#allocation5 + $0x970] sm:$0xff]
    %v375 = vld [vmem:[#allocation5 + $0x978] sm:$0xff]
    %v376 = vld [vmem:[#allocation5 + $0x980] sm:$0xff]
    %v377 = vld [vmem:[#allocation5 + $0x988] sm:$0xff]
    %v378 = vld [vmem:[#allocation5 + $0x990] sm:$0xff]
    %v379 = vld [vmem:[#allocation5 + $0x998] sm:$0xff]
    %v380 = vld [vmem:[#allocation5 + $0x9a0] sm:$0xff]
    %v381 = vld [vmem:[#allocation5 + $0x9a8] sm:$0xff]
    %v382 = vld [vmem:[#allocation5 + $0x9b0] sm:$0xff]
    %v383 = vld [vmem:[#allocation5 + $0x9b8] sm:$0xff]
    %v384 = vld [vmem:[#allocation5 + $0x9c0] sm:$0xff]
    %v385 = vld [vmem:[#allocation5 + $0x9c8] sm:$0xff]
    %v386 = vld [vmem:[#allocation5 + $0x9d0] sm:$0xff]
    %v387 = vld [vmem:[#allocation5 + $0x9d8] sm:$0xff]
    %v388 = vld [vmem:[#allocation5 + $0x9e0] sm:$0xff]
    %v389 = vld [vmem:[#allocation5 + $0x9e8] sm:$0xff]
    %v390 = vld [vmem:[#allocation5 + $0x9f0] sm:$0xff]
    %v391 = vld [vmem:[#allocation5 + $0x9f8] sm:$0xff]
    %v392 = vld [vmem:[#allocation5 + $0xa00] sm:$0xff]
    %v393 = vld [vmem:[#allocation5 + $0xa08] sm:$0xff]
    %v394 = vld [vmem:[#allocation5 + $0xa10] sm:$0xff]
    %v395 = vld [vmem:[#allocation5 + $0xa18] sm:$0xff]
    %v396 = vld [vmem:[#allocation5 + $0xa20] sm:$0xff]
    %v397 = vld [vmem:[#allocation5 + $0xa28] sm:$0xff]
    %v398 = vld [vmem:[#allocation5 + $0xa30] sm:$0xff]
    %v399 = vld [vmem:[#allocation5 + $0xa38] sm:$0xff]
    %v400 = vld [vmem:[#allocation5 + $0xa40] sm:$0xff]
    %v401 = vld [vmem:[#allocation5 + $0xa48] sm:$0xff]
    %v402 = vld [vmem:[#allocation5 + $0xa50] sm:$0xff]
    %v403 = vld [vmem:[#allocation5 + $0xa58] sm:$0xff]
    %v404 = vld [vmem:[#allocation5 + $0xa60] sm:$0xff]
    %v405 = vld [vmem:[#allocation5 + $0xa68] sm:$0xff]
    %v406 = vld [vmem:[#allocation5 + $0xa70] sm:$0xff]
    %v407 = vld [vmem:[#allocation5 + $0xa78] sm:$0xff]
    %v408 = vld [vmem:[#allocation5 + $0xa80] sm:$0xff]
    %v409 = vld [vmem:[#allocation5 + $0xa88] sm:$0xff]
    %v410 = vld [vmem:[#allocation5 + $0xa90] sm:$0xff]
    %v411 = vld [vmem:[#allocation5 + $0xa98] sm:$0xff]
    %v412 = vld [vmem:[#allocation5 + $0xaa0] sm:$0xff]
    %v413 = vld [vmem:[#allocation5 + $0xaa8] sm:$0xff]
    %v414 = vld [vmem:[#allocation5 + $0xab0] sm:$0xff]
    %v415 = vld [vmem:[#allocation5 + $0xab8] sm:$0xff]
    %v416 = vld [vmem:[#allocation5 + $0xac0] sm:$0xff]
    %v417 = vld [vmem:[#allocation5 + $0xac8] sm:$0xff]
    %v418 = vld [vmem:[#allocation5 + $0xad0] sm:$0xff]
    %v419 = vld [vmem:[#allocation5 + $0xad8] sm:$0xff]
    %v420 = vld [vmem:[#allocation5 + $0xae0] sm:$0xff]
    %v421 = vld [vmem:[#allocation5 + $0xae8] sm:$0xff]
    %v422 = vld [vmem:[#allocation5 + $0xaf0] sm:$0xff]
    %v423 = vld [vmem:[#allocation5 + $0xaf8] sm:$0xff]
    %v424 = vld [vmem:[#allocation5 + $0xb00] sm:$0xff]
    %v425 = vld [vmem:[#allocation5 + $0xb08] sm:$0xff]
    %v426 = vld [vmem:[#allocation5 + $0xb10] sm:$0xff]
    %v427 = vld [vmem:[#allocation5 + $0xb18] sm:$0xff]
    %v428 = vld [vmem:[#allocation5 + $0xb20] sm:$0xff]
    %v429 = vld [vmem:[#allocation5 + $0xb28] sm:$0xff]
    %v430 = vld [vmem:[#allocation5 + $0xb30] sm:$0xff]
    %v431 = vld [vmem:[#allocation5 + $0xb38] sm:$0xff]
    %v432 = vld [vmem:[#allocation5 + $0xb40] sm:$0xff]
    %v433 = vld [vmem:[#allocation5 + $0xb48] sm:$0xff]
    %v434 = vld [vmem:[#allocation5 + $0xb50] sm:$0xff]
    %v435 = vld [vmem:[#allocation5 + $0xb58] sm:$0xff]
    %v436 = vld [vmem:[#allocation5 + $0xb60] sm:$0xff]
    %v437 = vld [vmem:[#allocation5 + $0xb68] sm:$0xff]
    %v438 = vld [vmem:[#allocation5 + $0xb70] sm:$0xff]
    %v439 = vld [vmem:[#allocation5 + $0xb78] sm:$0xff]
    %v440 = vld [vmem:[#allocation5 + $0xb80] sm:$0xff]
    %v441 = vld [vmem:[#allocation5 + $0xb88] sm:$0xff]
    %v442 = vld [vmem:[#allocation5 + $0xb90] sm:$0xff]
    %v443 = vld [vmem:[#allocation5 + $0xb98] sm:$0xff]
    %v444 = vld [vmem:[#allocation5 + $0xba0] sm:$0xff]
    %v445 = vld [vmem:[#allocation5 + $0xba8] sm:$0xff]
    %v446 = vld [vmem:[#allocation5 + $0xbb0] sm:$0xff]
    %v447 = vld [vmem:[#allocation5 + $0xbb8] sm:$0xff]
    %v448 = vld [vmem:[#allocation5 + $0xbc0] sm:$0xff]
    %v449 = vld [vmem:[#allocation5 + $0xbc8] sm:$0xff]
    %v450 = vld [vmem:[#allocation5 + $0xbd0] sm:$0xff]
    %v451 = vld [vmem:[#allocation5 + $0xbd8] sm:$0xff]
    %v452 = vld [vmem:[#allocation5 + $0xbe0] sm:$0xff]
    %v453 = vld [vmem:[#allocation5 + $0xbe8] sm:$0xff]
    %v454 = vld [vmem:[#allocation5 + $0xbf0] sm:$0xff]
    %v455 = vld [vmem:[#allocation5 + $0xbf8] sm:$0xff]
    %v456 = vld [vmem:[#allocation5 + $0xc00] sm:$0xff]
    %v457 = vld [vmem:[#allocation5 + $0xc08] sm:$0xff]
    %v458 = vld [vmem:[#allocation5 + $0xc10] sm:$0xff]
    %v459 = vld [vmem:[#allocation5 + $0xc18] sm:$0xff]
    %v460 = vld [vmem:[#allocation5 + $0xc20] sm:$0xff]
    %v461 = vld [vmem:[#allocation5 + $0xc28] sm:$0xff]
    %v462 = vld [vmem:[#allocation5 + $0xc30] sm:$0xff]
    %v463 = vld [vmem:[#allocation5 + $0xc38] sm:$0xff]
    %v464 = vld [vmem:[#allocation5 + $0xc40] sm:$0xff]
    %v465 = vld [vmem:[#allocation5 + $0xc48] sm:$0xff]
    %v466 = vld [vmem:[#allocation5 + $0xc50] sm:$0xff]
    %v467 = vld [vmem:[#allocation5 + $0xc58] sm:$0xff]
    %v468 = vld [vmem:[#allocation5 + $0xc60] sm:$0xff]
    %v469 = vld [vmem:[#allocation5 + $0xc68] sm:$0xff]
    %v470 = vld [vmem:[#allocation5 + $0xc70] sm:$0xff]
    %v471 = vld [vmem:[#allocation5 + $0xc78] sm:$0xff]
    %v472 = vld [vmem:[#allocation5 + $0xc80] sm:$0xff]
    %v473 = vld [vmem:[#allocation5 + $0xc88] sm:$0xff]
    %v474 = vld [vmem:[#allocation5 + $0xc90] sm:$0xff]
    %v475 = vld [vmem:[#allocation5 + $0xc98] sm:$0xff]
    %v476 = vld [vmem:[#allocation5 + $0xca0] sm:$0xff]
    %v477 = vld [vmem:[#allocation5 + $0xca8] sm:$0xff]
    %v478 = vld [vmem:[#allocation5 + $0xcb0] sm:$0xff]
    %v479 = vld [vmem:[#allocation5 + $0xcb8] sm:$0xff]
    %v480 = vld [vmem:[#allocation5 + $0xcc0] sm:$0xff]
    %v481 = vld [vmem:[#allocation5 + $0xcc8] sm:$0xff]
    %v482 = vld [vmem:[#allocation5 + $0xcd0] sm:$0xff]
    %v483 = vld [vmem:[#allocation5 + $0xcd8] sm:$0xff]
    %v484 = vld [vmem:[#allocation5 + $0xce0] sm:$0xff]
    %v485 = vld [vmem:[#allocation5 + $0xce8] sm:$0xff]
    %v486 = vld [vmem:[#allocation5 + $0xcf0] sm:$0xff]
    %v487 = vld [vmem:[#allocation5 + $0xcf8] sm:$0xff]
    %v488 = vld [vmem:[#allocation5 + $0xd00] sm:$0xff]
    %v489 = vld [vmem:[#allocation5 + $0xd08] sm:$0xff]
    %v490 = vld [vmem:[#allocation5 + $0xd10] sm:$0xff]
    %v491 = vld [vmem:[#allocation5 + $0xd18] sm:$0xff]
    %v492 = vld [vmem:[#allocation5 + $0xd20] sm:$0xff]
    %v493 = vld [vmem:[#allocation5 + $0xd28] sm:$0xff]
    %v494 = vld [vmem:[#allocation5 + $0xd30] sm:$0xff]
    %v495 = vld [vmem:[#allocation5 + $0xd38] sm:$0xff]
    %v496 = vld [vmem:[#allocation5 + $0xd40] sm:$0xff]
    %v497 = vld [vmem:[#allocation5 + $0xd48] sm:$0xff]
    %v498 = vld [vmem:[#allocation5 + $0xd50] sm:$0xff]
    %v499 = vld [vmem:[#allocation5 + $0xd58] sm:$0xff]
    %v500 = vld [vmem:[#allocation5 + $0xd60] sm:$0xff]
    %v501 = vld [vmem:[#allocation5 + $0xd68] sm:$0xff]
    %v502 = vld [vmem:[#allocation5 + $0xd70] sm:$0xff]
    %v503 = vld [vmem:[#allocation5 + $0xd78] sm:$0xff]
    %v504 = vld [vmem:[#allocation5 + $0xd80] sm:$0xff]
    %v505 = vld [vmem:[#allocation5 + $0xd88] sm:$0xff]
    %v506 = vld [vmem:[#allocation5 + $0xd90] sm:$0xff]
    %v507 = vld [vmem:[#allocation5 + $0xd98] sm:$0xff]
    %v508 = vld [vmem:[#allocation5 + $0xda0] sm:$0xff]
    %v509 = vld [vmem:[#allocation5 + $0xda8] sm:$0xff]
    %v510 = vld [vmem:[#allocation5 + $0xdb0] sm:$0xff]
    %v511 = vld [vmem:[#allocation5 + $0xdb8] sm:$0xff]
    %v512 = vld [vmem:[#allocation5 + $0xdc0] sm:$0xff]
    %v513 = vld [vmem:[#allocation5 + $0xdc8] sm:$0xff]
    %v514 = vld [vmem:[#allocation5 + $0xdd0] sm:$0xff]
    %v515 = vld [vmem:[#allocation5 + $0xdd8] sm:$0xff]
    %v516 = vld [vmem:[#allocation5 + $0xde0] sm:$0xff]
    %v517 = vld [vmem:[#allocation5 + $0xde8] sm:$0xff]
    %v518 = vld [vmem:[#allocation5 + $0xdf0] sm:$0xff]
    %v519 = vld [vmem:[#allocation5 + $0xdf8] sm:$0xff]
    %v520 = vld [vmem:[#allocation5 + $0xe00] sm:$0xff]
    %v521 = vld [vmem:[#allocation5 + $0xe08] sm:$0xff]
    %v522 = vld [vmem:[#allocation5 + $0xe10] sm:$0xff]
    %v523 = vld [vmem:[#allocation5 + $0xe18] sm:$0xff]
    %v524 = vld [vmem:[#allocation5 + $0xe20] sm:$0xff]
    %v525 = vld [vmem:[#allocation5 + $0xe28] sm:$0xff]
    %v526 = vld [vmem:[#allocation5 + $0xe30] sm:$0xff]
    %v527 = vld [vmem:[#allocation5 + $0xe38] sm:$0xff]
    %v528 = vld [vmem:[#allocation5 + $0xe40] sm:$0xff]
    %v529 = vld [vmem:[#allocation5 + $0xe48] sm:$0xff]
    %v530 = vld [vmem:[#allocation5 + $0xe50] sm:$0xff]
    %v531 = vld [vmem:[#allocation5 + $0xe58] sm:$0xff]
    %v532 = vld [vmem:[#allocation5 + $0xe60] sm:$0xff]
    %v533 = vld [vmem:[#allocation5 + $0xe68] sm:$0xff]
    %v534 = vld [vmem:[#allocation5 + $0xe70] sm:$0xff]
    %v535 = vld [vmem:[#allocation5 + $0xe78] sm:$0xff]
    %v536 = vld [vmem:[#allocation5 + $0xe80] sm:$0xff]
    %v537 = vld [vmem:[#allocation5 + $0xe88] sm:$0xff]
    %v538 = vld [vmem:[#allocation5 + $0xe90] sm:$0xff]
    %v539 = vld [vmem:[#allocation5 + $0xe98] sm:$0xff]
    %v540 = vld [vmem:[#allocation5 + $0xea0] sm:$0xff]
    %v541 = vld [vmem:[#allocation5 + $0xea8] sm:$0xff]
    %v542 = vld [vmem:[#allocation5 + $0xeb0] sm:$0xff]
    %v543 = vld [vmem:[#allocation5 + $0xeb8] sm:$0xff]
    %v544 = vld [vmem:[#allocation5 + $0xec0] sm:$0xff]
    %v545 = vld [vmem:[#allocation5 + $0xec8] sm:$0xff]
    %v546 = vld [vmem:[#allocation5 + $0xed0] sm:$0xff]
    %v547 = vld [vmem:[#allocation5 + $0xed8] sm:$0xff]
    %v548 = vld [vmem:[#allocation5 + $0xee0] sm:$0xff]
    %v549 = vld [vmem:[#allocation5 + $0xee8] sm:$0xff]
    %v550 = vld [vmem:[#allocation5 + $0xef0] sm:$0xff]
    %v551 = vld [vmem:[#allocation5 + $0xef8] sm:$0xff]
    %v552 = vld [vmem:[#allocation5 + $0xf00] sm:$0xff]
    %v553 = vld [vmem:[#allocation5 + $0xf08] sm:$0xff]
    %v554 = vld [vmem:[#allocation5 + $0xf10] sm:$0xff]
    %v555 = vld [vmem:[#allocation5 + $0xf18] sm:$0xff]
    %v556 = vld [vmem:[#allocation5 + $0xf20] sm:$0xff]
    %v557 = vld [vmem:[#allocation5 + $0xf28] sm:$0xff]
    %v558 = vld [vmem:[#allocation5 + $0xf30] sm:$0xff]
    %v559 = vld [vmem:[#allocation5 + $0xf38] sm:$0xff]
    %v560 = vld [vmem:[#allocation5 + $0xf40] sm:$0xff]
    %v561 = vld [vmem:[#allocation5 + $0xf48] sm:$0xff]
    %v562 = vld [vmem:[#allocation5 + $0xf50] sm:$0xff]
    %v563 = vld [vmem:[#allocation5 + $0xf58] sm:$0xff]
    %v564 = vld [vmem:[#allocation5 + $0xf60] sm:$0xff]
    %v565 = vld [vmem:[#allocation5 + $0xf68] sm:$0xff]
    %v566 = vld [vmem:[#allocation5 + $0xf70] sm:$0xff]
    %v567 = vld [vmem:[#allocation5 + $0xf78] sm:$0xff]
    %v568 = vld [vmem:[#allocation5 + $0xf80] sm:$0xff]
    %v569 = vld [vmem:[#allocation5 + $0xf88] sm:$0xff]
    %v570 = vld [vmem:[#allocation5 + $0xf90] sm:$0xff]
    %v571 = vld [vmem:[#allocation5 + $0xf98] sm:$0xff]
    %v572 = vld [vmem:[#allocation5 + $0xfa0] sm:$0xff]
    %v573 = vld [vmem:[#allocation5 + $0xfa8] sm:$0xff]
    %v574 = vld [vmem:[#allocation5 + $0xfb0] sm:$0xff]
    %v575 = vld [vmem:[#allocation5 + $0xfb8] sm:$0xff]
    %v576 = vld [vmem:[#allocation5 + $0xfc0] sm:$0xff]
    %v577 = vld [vmem:[#allocation5 + $0xfc8] sm:$0xff]
    %v578 = vld [vmem:[#allocation5 + $0xfd0] sm:$0xff]
    %v579 = vld [vmem:[#allocation5 + $0xfd8] sm:$0xff]
    %v580 = vld [vmem:[#allocation5 + $0xfe0] sm:$0xff]
    %v581 = vld [vmem:[#allocation5 + $0xfe8] sm:$0xff]
    %v582 = vld [vmem:[#allocation5 + $0xff0] sm:$0xff]
    %v583 = vld [vmem:[#allocation5 + $0xff8] sm:$0xff]
    %v584 = vld [vmem:[#allocation7] sm:$0xf]
    %v586 = vlaneseq
    %v587 = vshrl.u32 %v586, 7
    %v588 = vsub.s32 0, %v587
    %v589 = vrot.slane %v584, %v588
    %v590 = vlaneseq
    %v591 = vshrl.u32 %v590, 7
    %v592 = vsub.s32 1, %v591
    %v593 = vrot.slane %v584, %v592
    %v594 = vlaneseq
    %v595 = vshrl.u32 %v594, 7
    %v596 = vsub.s32 2, %v595
    %v597 = vrot.slane %v584, %v596
    %v598 = vlaneseq
    %v599 = vshrl.u32 %v598, 7
    %v600 = vsub.s32 3, %v599
    %v601 = vrot.slane %v584, %v600
    %v608 = vcombine.high %v70, %v70
    %v610 = vunpack.c.l.s4 1983009808
    %v611 = vunpack.c.0.s8 %v610
    %v612 = vlaneseq
    %v613 = vshrl.u32 %v612, 7
    %v614 = vsub.s32 %v611, %v613
    %v615 = vrot.slane %v70, %v614
    %v617 = vunpack.c.l.s4 1983009808
    %v618 = vunpack.c.0.s8 %v617
    %v619 = vlaneseq
    %v620 = vshrl.u32 %v619, 7
    %v621 = vsub.s32 %v618, %v620
    %v622 = vrot.slane %v608, %v621
    %v623 = vcombine.high %v615, %v615
    %v624 = vcombine.high %v622, %v622
    %v625 = vcombine.high %v71, %v71
    %v627 = vunpack.c.l.s4 1983009808
    %v628 = vunpack.c.0.s8 %v627
    %v629 = vlaneseq
    %v630 = vshrl.u32 %v629, 7
    %v631 = vsub.s32 %v628, %v630
    %v632 = vrot.slane %v71, %v631
    %v634 = vunpack.c.l.s4 1983009808
    %v635 = vunpack.c.0.s8 %v634
    %v636 = vlaneseq
    %v637 = vshrl.u32 %v636, 7
    %v638 = vsub.s32 %v635, %v637
    %v639 = vrot.slane %v625, %v638
    %v640 = vcombine.high %v632, %v632
    %v641 = vcombine.high %v639, %v639
    %650 = vmatprep.subr.mxu0 %v73
    %651 = vmatpush1.msra.mxu0 %v72
    %652 = vmatprep.subr.mxu0 %v77
    %653 = vmatpush1.msra.mxu0 %v76
    %654 = vmatprep.subr.mxu0 %v81
    %655 = vmatpush1.msra.mxu0 %v80
    %656 = vmatprep.subr.mxu0 %v85
    %657 = vmatpush1.msra.mxu0 %v84
    %658 = vmatprep.subr.mxu0 %v89
    %659 = vmatpush1.msra.mxu0 %v88
    %660 = vmatprep.subr.mxu0 %v93
    %661 = vmatpush1.msra.mxu0 %v92
    %662 = vmatprep.subr.mxu0 %v97
    %663 = vmatpush1.msra.mxu0 %v96
    %664 = vmatprep.subr.mxu0 %v101
    %665 = vmatpush1.msra.mxu0 %v100
    %666 = vmatprep.subr.mxu0 %v105
    %667 = vmatpush1.msra.mxu0 %v104
    %668 = vmatprep.subr.mxu0 %v109
    %669 = vmatpush1.msra.mxu0 %v108
    %670 = vmatprep.subr.mxu0 %v113
    %671 = vmatpush1.msra.mxu0 %v112
    %672 = vmatprep.subr.mxu0 %v117
    %673 = vmatpush1.msra.mxu0 %v116
    %674 = vmatprep.subr.mxu0 %v121
    %675 = vmatpush1.msra.mxu0 %v120
    %676 = vmatprep.subr.mxu0 %v125
    %677 = vmatpush1.msra.mxu0 %v124
    %678 = vmatprep.subr.mxu0 %v129
    %679 = vmatpush1.msra.mxu0 %v128
    %680 = vmatprep.subr.mxu0 %v133
    %681 = vmatpush1.msra.mxu0 %v132
    %682 = vmatprep.subr.mxu0 %v137
    %683 = vmatpush1.msra.mxu0 %v136
    %684 = vmatprep.subr.mxu0 %v141
    %685 = vmatpush1.msra.mxu0 %v140
    %686 = vmatprep.subr.mxu0 %v145
    %687 = vmatpush1.msra.mxu0 %v144
    %688 = vmatprep.subr.mxu0 %v149
    %689 = vmatpush1.msra.mxu0 %v148
    %690 = vmatprep.subr.mxu0 %v153
    %691 = vmatpush1.msra.mxu0 %v152
    %692 = vmatprep.subr.mxu0 %v157
    %693 = vmatpush1.msra.mxu0 %v156
    %694 = vmatprep.subr.mxu0 %v161
    %695 = vmatpush1.msra.mxu0 %v160
    %696 = vmatprep.subr.mxu0 %v165
    %697 = vmatpush1.msra.mxu0 %v164
    %698 = vmatprep.subr.mxu0 %v169
    %699 = vmatpush1.msra.mxu0 %v168
    %700 = vmatprep.subr.mxu0 %v173
    %701 = vmatpush1.msra.mxu0 %v172
    %702 = vmatprep.subr.mxu0 %v177
    %703 = vmatpush1.msra.mxu0 %v176
    %704 = vmatprep.subr.mxu0 %v181
    %705 = vmatpush1.msra.mxu0 %v180
    %706 = vmatprep.subr.mxu0 %v185
    %707 = vmatpush1.msra.mxu0 %v184
    %708 = vmatprep.subr.mxu0 %v189
    %709 = vmatpush1.msra.mxu0 %v188
    %710 = vmatprep.subr.mxu0 %v193
    %711 = vmatpush1.msra.mxu0 %v192
    %712 = vmatprep.subr.mxu0 %v197
    %713 = vmatpush1.msra.mxu0 %v196
    %714 = vmatprep.mubr.f32.mxu0 %v623
    %715 = vmatmul.mubr.f32.gmra.mrb[0].mxu0 %v615
    %v716 = vpop.f32.mrb[0].mxu0
    %v717 = vadd.f32 %v589, %v716
    %v718 = vpop.f32.mrb[0].mxu0
    %v719 = vadd.f32 %v593, %v718
    %720 = vdwg.mxu0
    %721 = vmatprep.subr.mxu0 %v201
    %722 = vmatpush1.msra.mxu0 %v200
    %723 = vmatprep.subr.mxu0 %v205
    %724 = vmatpush1.msra.mxu0 %v204
    %725 = vmatprep.subr.mxu0 %v209
    %726 = vmatpush1.msra.mxu0 %v208
    %727 = vmatprep.subr.mxu0 %v213
    %728 = vmatpush1.msra.mxu0 %v212
    %729 = vmatprep.subr.mxu0 %v217
    %730 = vmatpush1.msra.mxu0 %v216
    %731 = vmatprep.subr.mxu0 %v221
    %732 = vmatpush1.msra.mxu0 %v220
    %733 = vmatprep.subr.mxu0 %v225
    %734 = vmatpush1.msra.mxu0 %v224
    %735 = vmatprep.subr.mxu0 %v229
    %736 = vmatpush1.msra.mxu0 %v228
    %737 = vmatprep.subr.mxu0 %v233
    %738 = vmatpush1.msra.mxu0 %v232
    %739 = vmatprep.subr.mxu0 %v237
    %740 = vmatpush1.msra.mxu0 %v236
    %741 = vmatprep.subr.mxu0 %v241
    %742 = vmatpush1.msra.mxu0 %v240
    %743 = vmatprep.subr.mxu0 %v245
    %744 = vmatpush1.msra.mxu0 %v244
    %745 = vmatprep.subr.mxu0 %v249
    %746 = vmatpush1.msra.mxu0 %v248
    %747 = vmatprep.subr.mxu0 %v253
    %748 = vmatpush1.msra.mxu0 %v252
    %749 = vmatprep.subr.mxu0 %v257
    %750 = vmatpush1.msra.mxu0 %v256
    %751 = vmatprep.subr.mxu0 %v261
    %752 = vmatpush1.msra.mxu0 %v260
    %753 = vmatprep.subr.mxu0 %v265
    %754 = vmatpush1.msra.mxu0 %v264
    %755 = vmatprep.subr.mxu0 %v269
    %756 = vmatpush1.msra.mxu0 %v268
    %757 = vmatprep.subr.mxu0 %v273
    %758 = vmatpush1.msra.mxu0 %v272
    %759 = vmatprep.subr.mxu0 %v277
    %760 = vmatpush1.msra.mxu0 %v276
    %761 = vmatprep.subr.mxu0 %v281
    %762 = vmatpush1.msra.mxu0 %v280
    %763 = vmatprep.subr.mxu0 %v285
    %764 = vmatpush1.msra.mxu0 %v284
    %765 = vmatprep.subr.mxu0 %v289
    %766 = vmatpush1.msra.mxu0 %v288
    %767 = vmatprep.subr.mxu0 %v293
    %768 = vmatpush1.msra.mxu0 %v292
    %769 = vmatprep.subr.mxu0 %v297
    %770 = vmatpush1.msra.mxu0 %v296
    %771 = vmatprep.subr.mxu0 %v301
    %772 = vmatpush1.msra.mxu0 %v300
    %773 = vmatprep.subr.mxu0 %v305
    %774 = vmatpush1.msra.mxu0 %v304
    %775 = vmatprep.subr.mxu0 %v309
    %776 = vmatpush1.msra.mxu0 %v308
    %777 = vmatprep.subr.mxu0 %v313
    %778 = vmatpush1.msra.mxu0 %v312
    %779 = vmatprep.subr.mxu0 %v317
    %780 = vmatpush1.msra.mxu0 %v316
    %781 = vmatprep.subr.mxu0 %v321
    %782 = vmatpush1.msra.mxu0 %v320
    %783 = vmatprep.subr.mxu0 %v325
    %784 = vmatpush1.msra.mxu0 %v324
    %785 = vmatprep.mubr.f32.mxu0 %v624
    %786 = vmatmul.mubr.f32.gmra.mrb[0].mxu0 %v622
    %v787 = vpop.f32.mrb[0].mxu0
    %v788 = vadd.f32 %v717, %v787
    %v789 = vpop.f32.mrb[0].mxu0
    %v790 = vadd.f32 %v719, %v789
    %791 = vdwg.mxu0
    %792 = vmatprep.subr.mxu0 %v329
    %793 = vmatpush1.msra.mxu0 %v328
    %794 = vmatprep.subr.mxu0 %v333
    %795 = vmatpush1.msra.mxu0 %v332
    %796 = vmatprep.subr.mxu0 %v337
    %797 = vmatpush1.msra.mxu0 %v336
    %798 = vmatprep.subr.mxu0 %v341
    %799 = vmatpush1.msra.mxu0 %v340
    %800 = vmatprep.subr.mxu0 %v345
    %801 = vmatpush1.msra.mxu0 %v344
    %802 = vmatprep.subr.mxu0 %v349
    %803 = vmatpush1.msra.mxu0 %v348
    %804 = vmatprep.subr.mxu0 %v353
    %805 = vmatpush1.msra.mxu0 %v352
    %806 = vmatprep.subr.mxu0 %v357
    %807 = vmatpush1.msra.mxu0 %v356
    %808 = vmatprep.subr.mxu0 %v361
    %809 = vmatpush1.msra.mxu0 %v360
    %810 = vmatprep.subr.mxu0 %v365
    %811 = vmatpush1.msra.mxu0 %v364
    %812 = vmatprep.subr.mxu0 %v369
    %813 = vmatpush1.msra.mxu0 %v368
    %814 = vmatprep.subr.mxu0 %v373
    %815 = vmatpush1.msra.mxu0 %v372
    %816 = vmatprep.subr.mxu0 %v377
    %817 = vmatpush1.msra.mxu0 %v376
    %818 = vmatprep.subr.mxu0 %v381
    %819 = vmatpush1.msra.mxu0 %v380
    %820 = vmatprep.subr.mxu0 %v385
    %821 = vmatpush1.msra.mxu0 %v384
    %822 = vmatprep.subr.mxu0 %v389
    %823 = vmatpush1.msra.mxu0 %v388
    %824 = vmatprep.subr.mxu0 %v393
    %825 = vmatpush1.msra.mxu0 %v392
    %826 = vmatprep.subr.mxu0 %v397
    %827 = vmatpush1.msra.mxu0 %v396
    %828 = vmatprep.subr.mxu0 %v401
    %829 = vmatpush1.msra.mxu0 %v400
    %830 = vmatprep.subr.mxu0 %v405
    %831 = vmatpush1.msra.mxu0 %v404
    %832 = vmatprep.subr.mxu0 %v409
    %833 = vmatpush1.msra.mxu0 %v408
    %834 = vmatprep.subr.mxu0 %v413
    %835 = vmatpush1.msra.mxu0 %v412
    %836 = vmatprep.subr.mxu0 %v417
    %837 = vmatpush1.msra.mxu0 %v416
    %838 = vmatprep.subr.mxu0 %v421
    %839 = vmatpush1.msra.mxu0 %v420
    %840 = vmatprep.subr.mxu0 %v425
    %841 = vmatpush1.msra.mxu0 %v424
    %842 = vmatprep.subr.mxu0 %v429
    %843 = vmatpush1.msra.mxu0 %v428
    %844 = vmatprep.subr.mxu0 %v433
    %845 = vmatpush1.msra.mxu0 %v432
    %846 = vmatprep.subr.mxu0 %v437
    %847 = vmatpush1.msra.mxu0 %v436
    %848 = vmatprep.subr.mxu0 %v441
    %849 = vmatpush1.msra.mxu0 %v440
    %850 = vmatprep.subr.mxu0 %v445
    %851 = vmatpush1.msra.mxu0 %v444
    %852 = vmatprep.subr.mxu0 %v449
    %853 = vmatpush1.msra.mxu0 %v448
    %854 = vmatprep.subr.mxu0 %v453
    %855 = vmatpush1.msra.mxu0 %v452
    %856 = vmatprep.mubr.f32.mxu0 %v640
    %857 = vmatmul.mubr.f32.gmra.mrb[0].mxu0 %v632
    %v858 = vpop.f32.mrb[0].mxu0
    %v859 = vadd.f32 %v788, %v858
    %v860 = vpop.f32.mrb[0].mxu0
    %v861 = vadd.f32 %v790, %v860
    %862 = vdwg.mxu0
    %863 = vmatprep.subr.mxu0 %v457
    %864 = vmatpush1.msra.mxu0 %v456
    %865 = vmatprep.subr.mxu0 %v461
    %866 = vmatpush1.msra.mxu0 %v460
    %867 = vmatprep.subr.mxu0 %v465
    %868 = vmatpush1.msra.mxu0 %v464
    %869 = vmatprep.subr.mxu0 %v469
    %870 = vmatpush1.msra.mxu0 %v468
    %871 = vmatprep.subr.mxu0 %v473
    %872 = vmatpush1.msra.mxu0 %v472
    %873 = vmatprep.subr.mxu0 %v477
    %874 = vmatpush1.msra.mxu0 %v476
    %875 = vmatprep.subr.mxu0 %v481
    %876 = vmatpush1.msra.mxu0 %v480
    %877 = vmatprep.subr.mxu0 %v485
    %878 = vmatpush1.msra.mxu0 %v484
    %879 = vmatprep.subr.mxu0 %v489
    %880 = vmatpush1.msra.mxu0 %v488
    %881 = vmatprep.subr.mxu0 %v493
    %882 = vmatpush1.msra.mxu0 %v492
    %883 = vmatprep.subr.mxu0 %v497
    %884 = vmatpush1.msra.mxu0 %v496
    %885 = vmatprep.subr.mxu0 %v501
    %886 = vmatpush1.msra.mxu0 %v500
    %887 = vmatprep.subr.mxu0 %v505
    %888 = vmatpush1.msra.mxu0 %v504
    %889 = vmatprep.subr.mxu0 %v509
    %890 = vmatpush1.msra.mxu0 %v508
    %891 = vmatprep.subr.mxu0 %v513
    %892 = vmatpush1.msra.mxu0 %v512
    %893 = vmatprep.subr.mxu0 %v517
    %894 = vmatpush1.msra.mxu0 %v516
    %895 = vmatprep.subr.mxu0 %v521
    %896 = vmatpush1.msra.mxu0 %v520
    %897 = vmatprep.subr.mxu0 %v525
    %898 = vmatpush1.msra.mxu0 %v524
    %899 = vmatprep.subr.mxu0 %v529
    %900 = vmatpush1.msra.mxu0 %v528
    %901 = vmatprep.subr.mxu0 %v533
    %902 = vmatpush1.msra.mxu0 %v532
    %903 = vmatprep.subr.mxu0 %v537
    %904 = vmatpush1.msra.mxu0 %v536
    %905 = vmatprep.subr.mxu0 %v541
    %906 = vmatpush1.msra.mxu0 %v540
    %907 = vmatprep.subr.mxu0 %v545
    %908 = vmatpush1.msra.mxu0 %v544
    %909 = vmatprep.subr.mxu0 %v549
    %910 = vmatpush1.msra.mxu0 %v548
    %911 = vmatprep.subr.mxu0 %v553
    %912 = vmatpush1.msra.mxu0 %v552
    %913 = vmatprep.subr.mxu0 %v557
    %914 = vmatpush1.msra.mxu0 %v556
    %915 = vmatprep.subr.mxu0 %v561
    %916 = vmatpush1.msra.mxu0 %v560
    %917 = vmatprep.subr.mxu0 %v565
    %918 = vmatpush1.msra.mxu0 %v564
    %919 = vmatprep.subr.mxu0 %v569
    %920 = vmatpush1.msra.mxu0 %v568
    %921 = vmatprep.subr.mxu0 %v573
    %922 = vmatpush1.msra.mxu0 %v572
    %923 = vmatprep.subr.mxu0 %v577
    %924 = vmatpush1.msra.mxu0 %v576
    %925 = vmatprep.subr.mxu0 %v581
    %926 = vmatpush1.msra.mxu0 %v580
    %927 = vmatprep.mubr.f32.mxu0 %v641
    %928 = vmatmul.mubr.f32.gmra.mrb[0].mxu0 %v639
    %v929 = vpop.f32.mrb[0].mxu0
    %v930 = vadd.f32 %v859, %v929
    %v931 = vpop.f32.mrb[0].mxu0
    %v932 = vadd.f32 %v861, %v931
    %933 = vdwg.mxu0
    %934 = vmatprep.subr.mxu0 %v75
    %935 = vmatpush1.msra.mxu0 %v74
    %936 = vmatprep.subr.mxu0 %v79
    %937 = vmatpush1.msra.mxu0 %v78
    %938 = vmatprep.subr.mxu0 %v83
    %939 = vmatpush1.msra.mxu0 %v82
    %940 = vmatprep.subr.mxu0 %v87
    %941 = vmatpush1.msra.mxu0 %v86
    %942 = vmatprep.subr.mxu0 %v91
    %943 = vmatpush1.msra.mxu0 %v90
    %944 = vmatprep.subr.mxu0 %v95
    %945 = vmatpush1.msra.mxu0 %v94
    %946 = vmatprep.subr.mxu0 %v99
    %947 = vmatpush1.msra.mxu0 %v98
    %948 = vmatprep.subr.mxu0 %v103
    %949 = vmatpush1.msra.mxu0 %v102
    %950 = vmatprep.subr.mxu0 %v107
    %951 = vmatpush1.msra.mxu0 %v106
    %952 = vmatprep.subr.mxu0 %v111
    %953 = vmatpush1.msra.mxu0 %v110
    %954 = vmatprep.subr.mxu0 %v115
    %955 = vmatpush1.msra.mxu0 %v114
    %956 = vmatprep.subr.mxu0 %v119
    %957 = vmatpush1.msra.mxu0 %v118
    %958 = vmatprep.subr.mxu0 %v123
    %959 = vmatpush1.msra.mxu0 %v122
    %960 = vmatprep.subr.mxu0 %v127
    %961 = vmatpush1.msra.mxu0 %v126
    %962 = vmatprep.subr.mxu0 %v131
    %963 = vmatpush1.msra.mxu0 %v130
    %964 = vmatprep.subr.mxu0 %v135
    %965 = vmatpush1.msra.mxu0 %v134
    %966 = vmatprep.subr.mxu0 %v139
    %967 = vmatpush1.msra.mxu0 %v138
    %968 = vmatprep.subr.mxu0 %v143
    %969 = vmatpush1.msra.mxu0 %v142
    %970 = vmatprep.subr.mxu0 %v147
    %971 = vmatpush1.msra.mxu0 %v146
    %972 = vmatprep.subr.mxu0 %v151
    %973 = vmatpush1.msra.mxu0 %v150
    %974 = vmatprep.subr.mxu0 %v155
    %975 = vmatpush1.msra.mxu0 %v154
    %976 = vmatprep.subr.mxu0 %v159
    %977 = vmatpush1.msra.mxu0 %v158
    %978 = vmatprep.subr.mxu0 %v163
    %979 = vmatpush1.msra.mxu0 %v162
    %980 = vmatprep.subr.mxu0 %v167
    %981 = vmatpush1.msra.mxu0 %v166
    %982 = vmatprep.subr.mxu0 %v171
    %983 = vmatpush1.msra.mxu0 %v170
    %984 = vmatprep.subr.mxu0 %v175
    %985 = vmatpush1.msra.mxu0 %v174
    %986 = vmatprep.subr.mxu0 %v179
    %987 = vmatpush1.msra.mxu0 %v178
    %988 = vmatprep.subr.mxu0 %v183
    %989 = vmatpush1.msra.mxu0 %v182
    %990 = vmatprep.subr.mxu0 %v187
    %991 = vmatpush1.msra.mxu0 %v186
    %992 = vmatprep.subr.mxu0 %v191
    %993 = vmatpush1.msra.mxu0 %v190
    %994 = vmatprep.subr.mxu0 %v195
    %995 = vmatpush1.msra.mxu0 %v194
    %996 = vmatprep.subr.mxu0 %v199
    %997 = vmatpush1.msra.mxu0 %v198
    %998 = vmatprep.mubr.f32.mxu0 %v623
    %999 = vmatmul.mubr.f32.gmra.mrb[0].mxu0 %v615
    %v1000 = vpop.f32.mrb[0].mxu0
    %v1001 = vadd.f32 %v597, %v1000
    %v1002 = vpop.f32.mrb[0].mxu0
    %v1003 = vadd.f32 %v601, %v1002
    %1004 = vdwg.mxu0
    %1005 = vmatprep.subr.mxu0 %v203
    %1006 = vmatpush1.msra.mxu0 %v202
    %1007 = vmatprep.subr.mxu0 %v207
    %1008 = vmatpush1.msra.mxu0 %v206
    %1009 = vmatprep.subr.mxu0 %v211
    %1010 = vmatpush1.msra.mxu0 %v210
    %1011 = vmatprep.subr.mxu0 %v215
    %1012 = vmatpush1.msra.mxu0 %v214
    %1013 = vmatprep.subr.mxu0 %v219
    %1014 = vmatpush1.msra.mxu0 %v218
    %1015 = vmatprep.subr.mxu0 %v223
    %1016 = vmatpush1.msra.mxu0 %v222
    %1017 = vmatprep.subr.mxu0 %v227
    %1018 = vmatpush1.msra.mxu0 %v226
    %1019 = vmatprep.subr.mxu0 %v231
    %1020 = vmatpush1.msra.mxu0 %v230
    %1021 = vmatprep.subr.mxu0 %v235
    %1022 = vmatpush1.msra.mxu0 %v234
    %1023 = vmatprep.subr.mxu0 %v239
    %1024 = vmatpush1.msra.mxu0 %v238
    %1025 = vmatprep.subr.mxu0 %v243
    %1026 = vmatpush1.msra.mxu0 %v242
    %1027 = vmatprep.subr.mxu0 %v247
    %1028 = vmatpush1.msra.mxu0 %v246
    %1029 = vmatprep.subr.mxu0 %v251
    %1030 = vmatpush1.msra.mxu0 %v250
    %1031 = vmatprep.subr.mxu0 %v255
    %1032 = vmatpush1.msra.mxu0 %v254
    %1033 = vmatprep.subr.mxu0 %v259
    %1034 = vmatpush1.msra.mxu0 %v258
    %1035 = vmatprep.subr.mxu0 %v263
    %1036 = vmatpush1.msra.mxu0 %v262
    %1037 = vmatprep.subr.mxu0 %v267
    %1038 = vmatpush1.msra.mxu0 %v266
    %1039 = vmatprep.subr.mxu0 %v271
    %1040 = vmatpush1.msra.mxu0 %v270
    %1041 = vmatprep.subr.mxu0 %v275
    %1042 = vmatpush1.msra.mxu0 %v274
    %1043 = vmatprep.subr.mxu0 %v279
    %1044 = vmatpush1.msra.mxu0 %v278
    %1045 = vmatprep.subr.mxu0 %v283
    %1046 = vmatpush1.msra.mxu0 %v282
    %1047 = vmatprep.subr.mxu0 %v287
    %1048 = vmatpush1.msra.mxu0 %v286
    %1049 = vmatprep.subr.mxu0 %v291
    %1050 = vmatpush1.msra.mxu0 %v290
    %1051 = vmatprep.subr.mxu0 %v295
    %1052 = vmatpush1.msra.mxu0 %v294
    %1053 = vmatprep.subr.mxu0 %v299
    %1054 = vmatpush1.msra.mxu0 %v298
    %1055 = vmatprep.subr.mxu0 %v303
    %1056 = vmatpush1.msra.mxu0 %v302
    %1057 = vmatprep.subr.mxu0 %v307
    %1058 = vmatpush1.msra.mxu0 %v306
    %1059 = vmatprep.subr.mxu0 %v311
    %1060 = vmatpush1.msra.mxu0 %v310
    %1061 = vmatprep.subr.mxu0 %v315
    %1062 = vmatpush1.msra.mxu0 %v314
    %1063 = vmatprep.subr.mxu0 %v319
    %1064 = vmatpush1.msra.mxu0 %v318
    %1065 = vmatprep.subr.mxu0 %v323
    %1066 = vmatpush1.msra.mxu0 %v322
    %1067 = vmatprep.subr.mxu0 %v327
    %1068 = vmatpush1.msra.mxu0 %v326
    %1069 = vmatprep.mubr.f32.mxu0 %v624
    %1070 = vmatmul.mubr.f32.gmra.mrb[0].mxu0 %v622
    %v1071 = vpop.f32.mrb[0].mxu0
    %v1072 = vadd.f32 %v1001, %v1071
    %v1073 = vpop.f32.mrb[0].mxu0
    %v1074 = vadd.f32 %v1003, %v1073
    %1075 = vdwg.mxu0
    %1076 = vmatprep.subr.mxu0 %v331
    %1077 = vmatpush1.msra.mxu0 %v330
    %1078 = vmatprep.subr.mxu0 %v335
    %1079 = vmatpush1.msra.mxu0 %v334
    %1080 = vmatprep.subr.mxu0 %v339
    %1081 = vmatpush1.msra.mxu0 %v338
    %1082 = vmatprep.subr.mxu0 %v343
    %1083 = vmatpush1.msra.mxu0 %v342
    %1084 = vmatprep.subr.mxu0 %v347
    %1085 = vmatpush1.msra.mxu0 %v346
    %1086 = vmatprep.subr.mxu0 %v351
    %1087 = vmatpush1.msra.mxu0 %v350
    %1088 = vmatprep.subr.mxu0 %v355
    %1089 = vmatpush1.msra.mxu0 %v354
    %1090 = vmatprep.subr.mxu0 %v359
    %1091 = vmatpush1.msra.mxu0 %v358
    %1092 = vmatprep.subr.mxu0 %v363
    %1093 = vmatpush1.msra.mxu0 %v362
    %1094 = vmatprep.subr.mxu0 %v367
    %1095 = vmatpush1.msra.mxu0 %v366
    %1096 = vmatprep.subr.mxu0 %v371
    %1097 = vmatpush1.msra.mxu0 %v370
    %1098 = vmatprep.subr.mxu0 %v375
    %1099 = vmatpush1.msra.mxu0 %v374
    %1100 = vmatprep.subr.mxu0 %v379
    %1101 = vmatpush1.msra.mxu0 %v378
    %1102 = vmatprep.subr.mxu0 %v383
    %1103 = vmatpush1.msra.mxu0 %v382
    %1104 = vmatprep.subr.mxu0 %v387
    %1105 = vmatpush1.msra.mxu0 %v386
    %1106 = vmatprep.subr.mxu0 %v391
    %1107 = vmatpush1.msra.mxu0 %v390
    %1108 = vmatprep.subr.mxu0 %v395
    %1109 = vmatpush1.msra.mxu0 %v394
    %1110 = vmatprep.subr.mxu0 %v399
    %1111 = vmatpush1.msra.mxu0 %v398
    %1112 = vmatprep.subr.mxu0 %v403
    %1113 = vmatpush1.msra.mxu0 %v402
    %1114 = vmatprep.subr.mxu0 %v407
    %1115 = vmatpush1.msra.mxu0 %v406
    %1116 = vmatprep.subr.mxu0 %v411
    %1117 = vmatpush1.msra.mxu0 %v410
    %1118 = vmatprep.subr.mxu0 %v415
    %1119 = vmatpush1.msra.mxu0 %v414
    %1120 = vmatprep.subr.mxu0 %v419
    %1121 = vmatpush1.msra.mxu0 %v418
    %1122 = vmatprep.subr.mxu0 %v423
    %1123 = vmatpush1.msra.mxu0 %v422
    %1124 = vmatprep.subr.mxu0 %v427
    %1125 = vmatpush1.msra.mxu0 %v426
    %1126 = vmatprep.subr.mxu0 %v431
    %1127 = vmatpush1.msra.mxu0 %v430
    %1128 = vmatprep.subr.mxu0 %v435
    %1129 = vmatpush1.msra.mxu0 %v434
    %1130 = vmatprep.subr.mxu0 %v439
    %1131 = vmatpush1.msra.mxu0 %v438
    %1132 = vmatprep.subr.mxu0 %v443
    %1133 = vmatpush1.msra.mxu0 %v442
    %1134 = vmatprep.subr.mxu0 %v447
    %1135 = vmatpush1.msra.mxu0 %v446
    %1136 = vmatprep.subr.mxu0 %v451
    %1137 = vmatpush1.msra.mxu0 %v450
    %1138 = vmatprep.subr.mxu0 %v455
    %1139 = vmatpush1.msra.mxu0 %v454
    %1140 = vmatprep.mubr.f32.mxu0 %v640
    %1141 = vmatmul.mubr.f32.gmra.mrb[0].mxu0 %v632
    %v1142 = vpop.f32.mrb[0].mxu0
    %v1143 = vadd.f32 %v1072, %v1142
    %v1144 = vpop.f32.mrb[0].mxu0
    %v1145 = vadd.f32 %v1074, %v1144
    %1146 = vdwg.mxu0
    %1147 = vmatprep.subr.mxu0 %v459
    %1148 = vmatpush1.msra.mxu0 %v458
    %1149 = vmatprep.subr.mxu0 %v463
    %1150 = vmatpush1.msra.mxu0 %v462
    %1151 = vmatprep.subr.mxu0 %v467
    %1152 = vmatpush1.msra.mxu0 %v466
    %1153 = vmatprep.subr.mxu0 %v471
    %1154 = vmatpush1.msra.mxu0 %v470
    %1155 = vmatprep.subr.mxu0 %v475
    %1156 = vmatpush1.msra.mxu0 %v474
    %1157 = vmatprep.subr.mxu0 %v479
    %1158 = vmatpush1.msra.mxu0 %v478
    %1159 = vmatprep.subr.mxu0 %v483
    %1160 = vmatpush1.msra.mxu0 %v482
    %1161 = vmatprep.subr.mxu0 %v487
    %1162 = vmatpush1.msra.mxu0 %v486
    %1163 = vmatprep.subr.mxu0 %v491
    %1164 = vmatpush1.msra.mxu0 %v490
    %1165 = vmatprep.subr.mxu0 %v495
    %1166 = vmatpush1.msra.mxu0 %v494
    %1167 = vmatprep.subr.mxu0 %v499
    %1168 = vmatpush1.msra.mxu0 %v498
    %1169 = vmatprep.subr.mxu0 %v503
    %1170 = vmatpush1.msra.mxu0 %v502
    %1171 = vmatprep.subr.mxu0 %v507
    %1172 = vmatpush1.msra.mxu0 %v506
    %1173 = vmatprep.subr.mxu0 %v511
    %1174 = vmatpush1.msra.mxu0 %v510
    %1175 = vmatprep.subr.mxu0 %v515
    %1176 = vmatpush1.msra.mxu0 %v514
    %1177 = vmatprep.subr.mxu0 %v519
    %1178 = vmatpush1.msra.mxu0 %v518
    %1179 = vmatprep.subr.mxu0 %v523
    %1180 = vmatpush1.msra.mxu0 %v522
    %1181 = vmatprep.subr.mxu0 %v527
    %1182 = vmatpush1.msra.mxu0 %v526
    %1183 = vmatprep.subr.mxu0 %v531
    %1184 = vmatpush1.msra.mxu0 %v530
    %1185 = vmatprep.subr.mxu0 %v535
    %1186 = vmatpush1.msra.mxu0 %v534
    %1187 = vmatprep.subr.mxu0 %v539
    %1188 = vmatpush1.msra.mxu0 %v538
    %1189 = vmatprep.subr.mxu0 %v543
    %1190 = vmatpush1.msra.mxu0 %v542
    %1191 = vmatprep.subr.mxu0 %v547
    %1192 = vmatpush1.msra.mxu0 %v546
    %1193 = vmatprep.subr.mxu0 %v551
    %1194 = vmatpush1.msra.mxu0 %v550
    %1195 = vmatprep.subr.mxu0 %v555
    %1196 = vmatpush1.msra.mxu0 %v554
    %1197 = vmatprep.subr.mxu0 %v559
    %1198 = vmatpush1.msra.mxu0 %v558
    %1199 = vmatprep.subr.mxu0 %v563
    %1200 = vmatpush1.msra.mxu0 %v562
    %1201 = vmatprep.subr.mxu0 %v567
    %1202 = vmatpush1.msra.mxu0 %v566
    %1203 = vmatprep.subr.mxu0 %v571
    %1204 = vmatpush1.msra.mxu0 %v570
    %1205 = vmatprep.subr.mxu0 %v575
    %1206 = vmatpush1.msra.mxu0 %v574
    %1207 = vmatprep.subr.mxu0 %v579
    %1208 = vmatpush1.msra.mxu0 %v578
    %1209 = vmatprep.subr.mxu0 %v583
    %1210 = vmatpush1.msra.mxu0 %v582
    %1211 = vmatprep.mubr.f32.mxu0 %v641
    %1212 = vmatmul.mubr.f32.gmra.mrb[0].mxu0 %v639
    %v1213 = vpop.f32.mrb[0].mxu0
    %v1214 = vadd.f32 %v1143, %v1213
    %v1215 = vpop.f32.mrb[0].mxu0
    %v1216 = vadd.f32 %v1145, %v1215
    %1217 = vdwg.mxu0
    %v1218 = vmax.f32 %v930, 0.0
    %v1219 = vmax.f32 %v932, 0.0
    %v1220 = vmax.f32 %v1214, 0.0
    %v1221 = vmax.f32 %v1216, 0.0
    %v1222 = vld [vmem:[%s3] sm:$0xff]
    %v1223 = vld [vmem:[%s3 + $0x8] sm:$0xff]
    %v1224 = vld [vmem:[%s3 + $0x10] sm:$0xff]
    %v1225 = vld [vmem:[%s3 + $0x18] sm:$0xff]
    %v1226 = vld [vmem:[%s3 + $0x20] sm:$0xff]
    %v1227 = vld [vmem:[%s3 + $0x28] sm:$0xff]
    %v1228 = vld [vmem:[%s3 + $0x30] sm:$0xff]
    %v1229 = vld [vmem:[%s3 + $0x38] sm:$0xff]
    %v1230 = vld [vmem:[%s3 + $0x40] sm:$0xff]
    %v1231 = vld [vmem:[%s3 + $0x48] sm:$0xff]
    %v1232 = vld [vmem:[%s3 + $0x50] sm:$0xff]
    %v1233 = vld [vmem:[%s3 + $0x58] sm:$0xff]
    %v1234 = vld [vmem:[%s3 + $0x60] sm:$0xff]
    %v1235 = vld [vmem:[%s3 + $0x68] sm:$0xff]
    %v1236 = vld [vmem:[%s3 + $0x70] sm:$0xff]
    %v1237 = vld [vmem:[%s3 + $0x78] sm:$0xff]
    %v1238 = vld [vmem:[%s3 + $0x80] sm:$0xff]
    %v1239 = vld [vmem:[%s3 + $0x88] sm:$0xff]
    %v1240 = vld [vmem:[%s3 + $0x90] sm:$0xff]
    %v1241 = vld [vmem:[%s3 + $0x98] sm:$0xff]
    %v1242 = vld [vmem:[%s3 + $0xa0] sm:$0xff]
    %v1243 = vld [vmem:[%s3 + $0xa8] sm:$0xff]
    %v1244 = vld [vmem:[%s3 + $0xb0] sm:$0xff]
    %v1245 = vld [vmem:[%s3 + $0xb8] sm:$0xff]
    %v1246 = vld [vmem:[%s3 + $0xc0] sm:$0xff]
    %v1247 = vld [vmem:[%s3 + $0xc8] sm:$0xff]
    %v1248 = vld [vmem:[%s3 + $0xd0] sm:$0xff]
    %v1249 = vld [vmem:[%s3 + $0xd8] sm:$0xff]
    %v1250 = vld [vmem:[%s3 + $0xe0] sm:$0xff]
    %v1251 = vld [vmem:[%s3 + $0xe8] sm:$0xff]
    %v1252 = vld [vmem:[%s3 + $0xf0] sm:$0xff]
    %v1253 = vld [vmem:[%s3 + $0xf8] sm:$0xff]
    %v1254 = vld [vmem:[%s3 + $0x100] sm:$0xff]
    %v1255 = vld [vmem:[%s3 + $0x108] sm:$0xff]
    %v1256 = vld [vmem:[%s3 + $0x110] sm:$0xff]
    %v1257 = vld [vmem:[%s3 + $0x118] sm:$0xff]
    %v1258 = vld [vmem:[%s3 + $0x120] sm:$0xff]
    %v1259 = vld [vmem:[%s3 + $0x128] sm:$0xff]
    %v1260 = vld [vmem:[%s3 + $0x130] sm:$0xff]
    %v1261 = vld [vmem:[%s3 + $0x138] sm:$0xff]
    %v1262 = vld [vmem:[%s3 + $0x140] sm:$0xff]
    %v1263 = vld [vmem:[%s3 + $0x148] sm:$0xff]
    %v1264 = vld [vmem:[%s3 + $0x150] sm:$0xff]
    %v1265 = vld [vmem:[%s3 + $0x158] sm:$0xff]
    %v1266 = vld [vmem:[%s3 + $0x160] sm:$0xff]
    %v1267 = vld [vmem:[%s3 + $0x168] sm:$0xff]
    %v1268 = vld [vmem:[%s3 + $0x170] sm:$0xff]
    %v1269 = vld [vmem:[%s3 + $0x178] sm:$0xff]
    %v1270 = vld [vmem:[%s3 + $0x180] sm:$0xff]
    %v1271 = vld [vmem:[%s3 + $0x188] sm:$0xff]
    %v1272 = vld [vmem:[%s3 + $0x190] sm:$0xff]
    %v1273 = vld [vmem:[%s3 + $0x198] sm:$0xff]
    %v1274 = vld [vmem:[%s3 + $0x1a0] sm:$0xff]
    %v1275 = vld [vmem:[%s3 + $0x1a8] sm:$0xff]
    %v1276 = vld [vmem:[%s3 + $0x1b0] sm:$0xff]
    %v1277 = vld [vmem:[%s3 + $0x1b8] sm:$0xff]
    %v1278 = vld [vmem:[%s3 + $0x1c0] sm:$0xff]
    %v1279 = vld [vmem:[%s3 + $0x1c8] sm:$0xff]
    %v1280 = vld [vmem:[%s3 + $0x1d0] sm:$0xff]
    %v1281 = vld [vmem:[%s3 + $0x1d8] sm:$0xff]
    %v1282 = vld [vmem:[%s3 + $0x1e0] sm:$0xff]
    %v1283 = vld [vmem:[%s3 + $0x1e8] sm:$0xff]
    %v1284 = vld [vmem:[%s3 + $0x1f0] sm:$0xff]
    %v1285 = vld [vmem:[%s3 + $0x1f8] sm:$0xff]
    %v1286 = vld [vmem:[#allocation8] sm:$0x1]
    %v1288 = vlaneseq
    %v1289 = vshrl.u32 %v1288, 7
    %v1290 = vsub.s32 0, %v1289
    %v1291 = vrot.slane %v1286, %v1290
    %1293 = vmatprep.subr.mxu0 0.0
    %1294 = vmatpush1.msra.mxu0 %v1222
    %1295 = vmatprep.subr.mxu0 0.0
    %1296 = vmatpush1.msra.mxu0 %v1223
    %1297 = vmatprep.subr.mxu0 0.0
    %1298 = vmatpush1.msra.mxu0 %v1224
    %1299 = vmatprep.subr.mxu0 0.0
    %1300 = vmatpush1.msra.mxu0 %v1225
    %1301 = vmatprep.subr.mxu0 0.0
    %1302 = vmatpush1.msra.mxu0 %v1226
    %1303 = vmatprep.subr.mxu0 0.0
    %1304 = vmatpush1.msra.mxu0 %v1227
    %1305 = vmatprep.subr.mxu0 0.0
    %1306 = vmatpush1.msra.mxu0 %v1228
    %1307 = vmatprep.subr.mxu0 0.0
    %1308 = vmatpush1.msra.mxu0 %v1229
    %1309 = vmatprep.subr.mxu0 0.0
    %1310 = vmatpush1.msra.mxu0 %v1230
    %1311 = vmatprep.subr.mxu0 0.0
    %1312 = vmatpush1.msra.mxu0 %v1231
    %1313 = vmatprep.subr.mxu0 0.0
    %1314 = vmatpush1.msra.mxu0 %v1232
    %1315 = vmatprep.subr.mxu0 0.0
    %1316 = vmatpush1.msra.mxu0 %v1233
    %1317 = vmatprep.subr.mxu0 0.0
    %1318 = vmatpush1.msra.mxu0 %v1234
    %1319 = vmatprep.subr.mxu0 0.0
    %1320 = vmatpush1.msra.mxu0 %v1235
    %1321 = vmatprep.subr.mxu0 0.0
    %1322 = vmatpush1.msra.mxu0 %v1236
    %1323 = vmatprep.subr.mxu0 0.0
    %1324 = vmatpush1.msra.mxu0 %v1237
    %1325 = vmatprep.subr.mxu0 0.0
    %1326 = vmatpush1.msra.mxu0 %v1238
    %1327 = vmatprep.subr.mxu0 0.0
    %1328 = vmatpush1.msra.mxu0 %v1239
    %1329 = vmatprep.subr.mxu0 0.0
    %1330 = vmatpush1.msra.mxu0 %v1240
    %1331 = vmatprep.subr.mxu0 0.0
    %1332 = vmatpush1.msra.mxu0 %v1241
    %1333 = vmatprep.subr.mxu0 0.0
    %1334 = vmatpush1.msra.mxu0 %v1242
    %1335 = vmatprep.subr.mxu0 0.0
    %1336 = vmatpush1.msra.mxu0 %v1243
    %1337 = vmatprep.subr.mxu0 0.0
    %1338 = vmatpush1.msra.mxu0 %v1244
    %1339 = vmatprep.subr.mxu0 0.0
    %1340 = vmatpush1.msra.mxu0 %v1245
    %1341 = vmatprep.subr.mxu0 0.0
    %1342 = vmatpush1.msra.mxu0 %v1246
    %1343 = vmatprep.subr.mxu0 0.0
    %1344 = vmatpush1.msra.mxu0 %v1247
    %1345 = vmatprep.subr.mxu0 0.0
    %1346 = vmatpush1.msra.mxu0 %v1248
    %1347 = vmatprep.subr.mxu0 0.0
    %1348 = vmatpush1.msra.mxu0 %v1249
    %1349 = vmatprep.subr.mxu0 0.0
    %1350 = vmatpush1.msra.mxu0 %v1250
    %1351 = vmatprep.subr.mxu0 0.0
    %1352 = vmatpush1.msra.mxu0 %v1251
    %1353 = vmatprep.subr.mxu0 0.0
    %1354 = vmatpush1.msra.mxu0 %v1252
    %1355 = vmatprep.subr.mxu0 0.0
    %1356 = vmatpush1.msra.mxu0 %v1253
    %1357 = vmatprep.mubr.f32.mxu0 %v1219
    %1358 = vmatmul.mubr.f32.gmra.mrb[0].mxu0 %v1218
    %v1359 = vpop.f32.mrb[0].mxu0
    %v1360 = vadd.f32 %v1291, %v1359
    %v1361 = vpop.f32.mrb[0].mxu0
    %1362 = vdwg.mxu0
    %1363 = vmatprep.subr.mxu0 0.0
    %1364 = vmatpush1.msra.mxu0 %v1254
    %1365 = vmatprep.subr.mxu0 0.0
    %1366 = vmatpush1.msra.mxu0 %v1255
    %1367 = vmatprep.subr.mxu0 0.0
    %1368 = vmatpush1.msra.mxu0 %v1256
    %1369 = vmatprep.subr.mxu0 0.0
    %1370 = vmatpush1.msra.mxu0 %v1257
    %1371 = vmatprep.subr.mxu0 0.0
    %1372 = vmatpush1.msra.mxu0 %v1258
    %1373 = vmatprep.subr.mxu0 0.0
    %1374 = vmatpush1.msra.mxu0 %v1259
    %1375 = vmatprep.subr.mxu0 0.0
    %1376 = vmatpush1.msra.mxu0 %v1260
    %1377 = vmatprep.subr.mxu0 0.0
    %1378 = vmatpush1.msra.mxu0 %v1261
    %1379 = vmatprep.subr.mxu0 0.0
    %1380 = vmatpush1.msra.mxu0 %v1262
    %1381 = vmatprep.subr.mxu0 0.0
    %1382 = vmatpush1.msra.mxu0 %v1263
    %1383 = vmatprep.subr.mxu0 0.0
    %1384 = vmatpush1.msra.mxu0 %v1264
    %1385 = vmatprep.subr.mxu0 0.0
    %1386 = vmatpush1.msra.mxu0 %v1265
    %1387 = vmatprep.subr.mxu0 0.0
    %1388 = vmatpush1.msra.mxu0 %v1266
    %1389 = vmatprep.subr.mxu0 0.0
    %1390 = vmatpush1.msra.mxu0 %v1267
    %1391 = vmatprep.subr.mxu0 0.0
    %1392 = vmatpush1.msra.mxu0 %v1268
    %1393 = vmatprep.subr.mxu0 0.0
    %1394 = vmatpush1.msra.mxu0 %v1269
    %1395 = vmatprep.subr.mxu0 0.0
    %1396 = vmatpush1.msra.mxu0 %v1270
    %1397 = vmatprep.subr.mxu0 0.0
    %1398 = vmatpush1.msra.mxu0 %v1271
    %1399 = vmatprep.subr.mxu0 0.0
    %1400 = vmatpush1.msra.mxu0 %v1272
    %1401 = vmatprep.subr.mxu0 0.0
    %1402 = vmatpush1.msra.mxu0 %v1273
    %1403 = vmatprep.subr.mxu0 0.0
    %1404 = vmatpush1.msra.mxu0 %v1274
    %1405 = vmatprep.subr.mxu0 0.0
    %1406 = vmatpush1.msra.mxu0 %v1275
    %1407 = vmatprep.subr.mxu0 0.0
    %1408 = vmatpush1.msra.mxu0 %v1276
    %1409 = vmatprep.subr.mxu0 0.0
    %1410 = vmatpush1.msra.mxu0 %v1277
    %1411 = vmatprep.subr.mxu0 0.0
    %1412 = vmatpush1.msra.mxu0 %v1278
    %1413 = vmatprep.subr.mxu0 0.0
    %1414 = vmatpush1.msra.mxu0 %v1279
    %1415 = vmatprep.subr.mxu0 0.0
    %1416 = vmatpush1.msra.mxu0 %v1280
    %1417 = vmatprep.subr.mxu0 0.0
    %1418 = vmatpush1.msra.mxu0 %v1281
    %1419 = vmatprep.subr.mxu0 0.0
    %1420 = vmatpush1.msra.mxu0 %v1282
    %1421 = vmatprep.subr.mxu0 0.0
    %1422 = vmatpush1.msra.mxu0 %v1283
    %1423 = vmatprep.subr.mxu0 0.0
    %1424 = vmatpush1.msra.mxu0 %v1284
    %1425 = vmatprep.subr.mxu0 0.0
    %1426 = vmatpush1.msra.mxu0 %v1285
    %1427 = vmatprep.mubr.f32.mxu0 %v1221
    %1428 = vmatmul.mubr.f32.gmra.mrb[0].mxu0 %v1220
    %v1429 = vpop.f32.mrb[0].mxu0
    %v1430 = vadd.f32 %v1360, %v1429
    %v1431 = vpop.f32.mrb[0].mxu0
    %1432 = vdwg.mxu0
    %vm1433 = vcmask 9216
    %v1434 = vsel %vm1433, %v1430, -inf
    %1435 = vmax.xlane.f32.xlu0 %v1434
    %v1436 = vpop.xlane.xlu0 %1435
    %v1437 = vsub.f32 %v1430, %v1436
    %v1438 = vmul.f32 %v1437, 1.442695
    %v1439 = vpow.pop %v1438
    %v1440 = vsel %vm1433, %v1439, 0.0
    %1441 = vadd.xlane.f32.xlu0 %v1440
    %v1442 = vpop.xlane.xlu0 %1441
    %v1443 = vlog2.pop %v1442
    %v1444 = vmul.f32 %v1443, 0.6931472
    %v1445 = vadd.f32 %v1436, %v1444
    %v1446 = vsub.f32 %v1430, %v1445
    %1447 = vst.msk [vmem:[#allocation10] sm:$0x3] %vm1433, %v1446
    // Predicated region
    $region38: #{tpu_custom_call.1} parent=1 // pred_check
      _
    $region39: #{tpu_custom_call.1} parent=1 // pred_check_branch
      %1449 = sbr.rel (0) target = $region41
    $region40: #{tpu_custom_call.1} parent=1 // pred_region
      %s1451 = ssub.s32 32, 32
      %1452 = vsyncadd [#allocation4], %s1451
      %s1454 = sshll.u32 [#allocation10], 4
      %s1455 = int_to_ptr.vmem [resolvable:$true] %s1454
      %1457 = dma.vmem_to_hbm [thread:$0]  %s1455, 32, %s5, [#allocation4]
    $region41: #{tpu_custom_call.1} parent=1 // pred_fallthru
      _
    // Predicated region
    $region42: #{tpu_custom_call.1} parent=1 // pred_check
      _
    $region43: #{tpu_custom_call.1} parent=1 // pred_check_branch
      %1459 = sbr.rel (0) target = $region45
    $region44: #{tpu_custom_call.1} parent=1 // pred_region
      %1460 = dma.done [#allocation4], 32
    $region45: #{tpu_custom_call.1} parent=1 // pred_fallthru
      _
    %1461 = vsyncpa [#allocation3], 1
    %1462 = vsyncpa [#allocation6], 1
    %1463 = vsyncpa [#allocation9], 1
    %1464 = vsyncpa [#allocation4], 1

</llo_original>
